<compile_context>
chip_gen: v6e
topology: v6e:2x2x1
jax: 0.10.0
libtpu: 0.0.40
codegen_flags: <defaults>
</compile_context>

<pallas_src>
import math
import jax
import jax.numpy as jnp
from jax import lax
from jax.experimental import pallas as pl
from jax.experimental.pallas import tpu as pltpu

MODEL_DIM = 40
NUM_HEADS = 4
HEAD_DIM = MODEL_DIM // NUM_HEADS
FF_DIM = 4 * MODEL_DIM
OUT_DIM = 1
LN_EPS = 1e-5
MASK_NEG = -1e30
TARGET_ROWS = 512   # rows (BB*S) per matmul pass; >=2 MXU row-blocks on v6e/v7x, 4 on v5e


def transformer_classifier_kernel(
    x_ref, bias_ref, pe_ref,
    wqkv_ref, bqkv_ref, wo_ref,
    w1_ref, b1_ref, w2_ref,
    vec_ref, fc_ref,
    o_ref,
):
    BB, S, D = x_ref.shape
    H, Dh = NUM_HEADS, HEAD_DIM
    inv_d = 1.0 / D
    inv_s = 1.0 / S

    vec = vec_ref[...]                     # (6, D): [bo, ln1w, ln1b, b2, ln2w, ln2b]
    bo, ln1w, ln1b = vec[0:1], vec[1:2], vec[2:3]
    b2, ln2w, ln2b = vec[3:4], vec[4:5], vec[5:6]

    # Positional encoding, then fold batch into the M dimension for all dense matmuls.
    x = x_ref[...] + pe_ref[...][None]                 # (BB, S, D)
    x2 = x.reshape(BB * S, D)

    # Fused QKV projection: one (BB*S, D) @ (D, 3D) pass (1/sqrt(Dh) folded into Q cols).
    qkv = jnp.dot(x2, wqkv_ref[...], preferred_element_type=jnp.float32) + bqkv_ref[...]
    qkv = qkv.reshape(BB, S, 3 * D)

    bias = bias_ref[...]                               # (BB, 1, S): 0 valid / -1e30 padded

    # Attention: per-head, batched over the BB batch elements (S=8, Dh=10 -> tiny blocks).
    ctx_heads = []
    for h in range(H):
        qh = qkv[:, :, h * Dh:(h + 1) * Dh]                        # (BB, S, Dh)
        kh = qkv[:, :, D + h * Dh:D + (h + 1) * Dh]                # (BB, S, Dh)
        vh = qkv[:, :, 2 * D + h * Dh:2 * D + (h + 1) * Dh]        # (BB, S, Dh)
        s = jnp.einsum("bqd,bkd->bqk", qh, kh,
                       preferred_element_type=jnp.float32)         # (BB, S, S)
        s = s + bias                                               # mask padded keys
        m = jnp.max(s, axis=-1, keepdims=True)
        e = jnp.exp(s - m)
        p = e * pl.reciprocal(jnp.sum(e, axis=-1, keepdims=True), approx=True)
        ctx_heads.append(jnp.einsum("bqk,bkd->bqd", p, vh,
                                    preferred_element_type=jnp.float32))
    ctx = jnp.concatenate(ctx_heads, axis=-1).reshape(BB * S, D)   # concat heads -> (BB*S, D)

    # Output projection (one full-width matmul), residual + LayerNorm1 (post-norm).
    attn = jnp.dot(ctx, wo_ref[...], preferred_element_type=jnp.float32) + bo
    h1 = x2 + attn
    mu = jnp.sum(h1, axis=-1, keepdims=True) * inv_d
    var = jnp.sum((h1 - mu) ** 2, axis=-1, keepdims=True) * inv_d
    h1 = (h1 - mu) * lax.rsqrt(var + LN_EPS) * ln1w + ln1b

    # Feed-forward (ReLU), residual + LayerNorm2.
    f = jnp.dot(h1, w1_ref[...], preferred_element_type=jnp.float32) + b1_ref[...]
    f = jnp.maximum(f, 0.0)
    f = jnp.dot(f, w2_ref[...], preferred_element_type=jnp.float32) + b2
    h2 = h1 + f
    mu2 = jnp.sum(h2, axis=-1, keepdims=True) * inv_d
    var2 = jnp.sum((h2 - mu2) ** 2, axis=-1, keepdims=True) * inv_d
    h2 = (h2 - mu2) * lax.rsqrt(var2 + LN_EPS) * ln2w + ln2b

    # Mean over sequence (includes padded positions, like the PyTorch forward) + final Linear.
    pooled = h2.reshape(BB, S, D).sum(axis=1) * inv_s              # (BB, D)
    fc = fc_ref[...]                                               # (D+1, OUT_DIM): [W; b]
    out = jnp.dot(pooled, fc[:D], preferred_element_type=jnp.float32) + fc[D:D + 1]
    o_ref[...] = out                                               # (BB, OUT_DIM)


def transformer_classifier(x, padding_mask, params, *, target_rows=TARGET_ROWS):
    """x: (B, S, MODEL_DIM) f32, padding_mask: (B, S) bool (True = pad). Returns (B, 1)."""
    B, S, D = x.shape
    BB = max(1, min(B, target_rows // S))    # batch elements per grid step
    G = pl.cdiv(B, BB)                       # grid length (>=2 for large B -> v7x megacore)
    Bp = G * BB
    if Bp != B:                              # pad batch so the grid tiles exactly
        x = jnp.concatenate([x, jnp.zeros((Bp - B, S, D), x.dtype)], axis=0)
        padding_mask = jnp.concatenate(
            [padding_mask, jnp.zeros((Bp - B, S), dtype=bool)], axis=0)

    pe = params["pe"][:S].astype(jnp.float32)                                  # (S, D)
    bias = jnp.where(padding_mask, MASK_NEG, 0.0).astype(jnp.float32)[:, None, :]  # (Bp, 1, S)

    inputs = (
        x, bias, pe,
        params["wqkv"], params["bqkv"], params["wo"],
        params["w1"], params["b1"], params["w2"],
        params["vec"], params["fc"],
    )

    def const_spec(a):
        n = a.ndim
        return pl.BlockSpec(a.shape, lambda b, n=n: (0,) * n)

    in_specs = [
        pl.BlockSpec((BB, S, D), lambda b: (b, 0, 0)),   # x: BB batch elements per step
        pl.BlockSpec((BB, 1, S), lambda b: (b, 0, 0)),   # mask bias for those elements
    ] + [const_spec(a) for a in inputs[2:]]              # grid-invariant parameters

    out = pl.pallas_call(
        transformer_classifier_kernel,
        out_shape=jax.ShapeDtypeStruct((G, BB, OUT_DIM), jnp.float32),
        grid_spec=pltpu.PrefetchScalarGridSpec(
            num_scalar_prefetch=0,
            grid=(G,),
            in_specs=in_specs,
            out_specs=pl.BlockSpec((None, BB, OUT_DIM), lambda b: (b, 0, 0)),
        ),
        compiler_params=pltpu.CompilerParams(dimension_semantics=("parallel",)),
    )(*inputs)
    return out.reshape(Bp, OUT_DIM)[:B]


# -------------------- parameter construction (deterministic, synthetic) --------------------

def positional_encoding(max_len, model_dim):
    position = jnp.arange(max_len, dtype=jnp.float32)[:, None]
    div_term = jnp.exp(jnp.arange(0, model_dim, 2, dtype=jnp.float32)
                       * (-math.log(10000.0) / model_dim))
    pe = jnp.zeros((max_len, model_dim), jnp.float32)
    pe = pe.at[:, 0::2].set(jnp.sin(position * div_term))
    pe = pe.at[:, 1::2].set(jnp.cos(position * div_term))
    return pe


def init_raw_params(key, max_len):
    D, F = MODEL_DIM, FF_DIM
    ks = jax.random.split(key, 10)
    w = lambda k, shape, s=0.05: jax.random.normal(k, shape, jnp.float32) * s
    # raw PyTorch-layout parameters (nn.TransformerEncoderLayer / nn.Linear conventions)
    return dict(
        pe=positional_encoding(max_len, D),
        in_proj_w=w(ks[0], (3 * D, D)),
        in_proj_b=w(ks[1], (3 * D,)),
        out_proj_w=w(ks[2], (D, D)),
        out_proj_b=w(ks[3], (D,)),
        lin1_w=w(ks[4], (F, D)), lin1_b=w(ks[5], (F,)),
        lin2_w=w(ks[6], (D, F)), lin2_b=w(ks[7], (D,)),
        ln1w=jnp.ones((D,), jnp.float32), ln1b=jnp.zeros((D,), jnp.float32),
        ln2w=jnp.ones((D,), jnp.float32), ln2b=jnp.zeros((D,), jnp.float32),
        fc_w=w(ks[8], (OUT_DIM, D)), fc_b=w(ks[9], (OUT_DIM,)),
    )


def pack_params(raw):
    """Repack PyTorch-layout params into the kernel layout (fused / pre-transposed)."""
    D, F = MODEL_DIM, FF_DIM
    scale = 1.0 / math.sqrt(HEAD_DIM)
    wq, wk, wv = raw["in_proj_w"][:D], raw["in_proj_w"][D:2 * D], raw["in_proj_w"][2 * D:]
    bq, bk, bv = raw["in_proj_b"][:D], raw["in_proj_b"][D:2 * D], raw["in_proj_b"][2 * D:]
    # x @ wqkv == [Q*scale | K | V]  (scale folded into Q weights + bias)
    wqkv = jnp.concatenate([wq.T * scale, wk.T, wv.T], axis=1)                 # (D, 3D)
    bqkv = jnp.concatenate([bq * scale, bk, bv]).reshape(1, 3 * D)             # (1, 3D)
    vec = jnp.stack([raw["out_proj_b"], raw["ln1w"], raw["ln1b"],
                     raw["lin2_b"], raw["ln2w"], raw["ln2b"]], axis=0)         # (6, D)
    fc = jnp.concatenate([raw["fc_w"].T, raw["fc_b"].reshape(1, OUT_DIM)], axis=0)  # (D+1, 1)
    return dict(
        pe=raw["pe"],
        wqkv=wqkv, bqkv=bqkv,
        wo=raw["out_proj_w"].T,                                                # (D, D)
        w1=raw["lin1_w"].T, b1=raw["lin1_b"].reshape(1, F),                    # (D, F), (1, F)
        w2=raw["lin2_w"].T,                                                    # (F, D)
        vec=vec, fc=fc,
    )


# -------------------- pure-JAX reference (mirrors the PyTorch forward, eval mode) --------------------

def reference_forward(x, padding_mask, raw):
    B, S, D = x.shape
    H, Dh = NUM_HEADS, HEAD_DIM
    h = x + raw["pe"][None, :S]
    qkv = jnp.einsum("bsd,ed->bse", h, raw["in_proj_w"]) + raw["in_proj_b"]
    q = qkv[..., :D].reshape(B, S, H, Dh)
    k = qkv[..., D:2 * D].reshape(B, S, H, Dh)
    v = qkv[..., 2 * D:].reshape(B, S, H, Dh)
    s = jnp.einsum("bqhd,bkhd->bhqk", q, k) / math.sqrt(Dh)
    s = s + jnp.where(padding_mask, MASK_NEG, 0.0)[:, None, None, :]
    p = jax.nn.softmax(s, axis=-1)
    ctx = jnp.einsum("bhqk,bkhd->bqhd", p, v).reshape(B, S, D)
    attn = jnp.einsum("bsd,ed->bse", ctx, raw["out_proj_w"]) + raw["out_proj_b"]

    def ln(z, g, b):
        mu = z.mean(-1, keepdims=True)
        var = ((z - mu) ** 2).mean(-1, keepdims=True)
        return (z - mu) / jnp.sqrt(var + LN_EPS) * g + b

    h1 = ln(h + attn, raw["ln1w"], raw["ln1b"])
    f = jax.nn.relu(h1 @ raw["lin1_w"].T + raw["lin1_b"]) @ raw["lin2_w"].T + raw["lin2_b"]
    h2 = ln(h1 + f, raw["ln2w"], raw["ln2b"])
    pooled = h2.mean(axis=1)
    return pooled @ raw["fc_w"].T + raw["fc_b"]


if __name__ == "__main__":
    B, S = 2, 8  # batch=2, sequence_length = max_len = 8, model_dim = 40
    key = jax.random.PRNGKey(0)
    kx, kp = jax.random.split(key)
    x = jax.random.normal(kx, (B, S, MODEL_DIM), jnp.float32)
    # True = padded position (PyTorch src_key_padding_mask convention)
    padding_mask = jnp.array(
        [[False] * S,
         [False] * (S - 2) + [True] * 2], dtype=bool)

    raw = init_raw_params(kp, S)
    params = pack_params(raw)

    out = transformer_classifier(x, padding_mask, params)
    out = jax.block_until_ready(out)

    ref = reference_forward(x, padding_mask, raw)
    assert out.shape == (B, OUT_DIM), out.shape
    assert jnp.allclose(out, ref, atol=5e-3, rtol=5e-3), (out, ref)
    print("KERNEL_OK")
</pallas_src>

<mosaic_0001>
module attributes {stable_mosaic.version = 11 : i64} {
  func.func @transformer_classifier_kernel(%arg0: i32, %arg1: memref<2x8x40xf32, #tpu.memory_space<vmem>>, %arg2: memref<2x1x8xf32, #tpu.memory_space<vmem>>, %arg3: memref<8x40xf32, #tpu.memory_space<vmem>>, %arg4: memref<40x120xf32, #tpu.memory_space<vmem>>, %arg5: memref<1x120xf32, #tpu.memory_space<vmem>>, %arg6: memref<40x40xf32, #tpu.memory_space<vmem>>, %arg7: memref<40x160xf32, #tpu.memory_space<vmem>>, %arg8: memref<1x160xf32, #tpu.memory_space<vmem>>, %arg9: memref<160x40xf32, #tpu.memory_space<vmem>>, %arg10: memref<6x40xf32, #tpu.memory_space<vmem>>, %arg11: memref<41x1xf32, #tpu.memory_space<vmem>>, %arg12: memref<1x2x1xf32, #tpu.memory_space<vmem>>) attributes {dimension_semantics = [#tpu.dimension_semantics<parallel>], iteration_bounds = array<i64: 1>, scalar_prefetch = 0 : i64, scratch_operands = 0 : i64, tpu.core_type = #tpu.core_type<tc>, window_params = [{transform_indices = @transform_0, window_bounds = array<i64: 2, 8, 40>}, {transform_indices = @transform_1, window_bounds = array<i64: 2, 1, 8>}, {pipeline_mode = #tpu.pipeline_mode<synchronous>, transform_indices = @transform_2, window_bounds = array<i64: 8, 40>}, {pipeline_mode = #tpu.pipeline_mode<synchronous>, transform_indices = @transform_3, window_bounds = array<i64: 40, 120>}, {pipeline_mode = #tpu.pipeline_mode<synchronous>, transform_indices = @transform_4, window_bounds = array<i64: 1, 120>}, {pipeline_mode = #tpu.pipeline_mode<synchronous>, transform_indices = @transform_5, window_bounds = array<i64: 40, 40>}, {pipeline_mode = #tpu.pipeline_mode<synchronous>, transform_indices = @transform_6, window_bounds = array<i64: 40, 160>}, {pipeline_mode = #tpu.pipeline_mode<synchronous>, transform_indices = @transform_7, window_bounds = array<i64: 1, 160>}, {pipeline_mode = #tpu.pipeline_mode<synchronous>, transform_indices = @transform_8, window_bounds = array<i64: 160, 40>}, {pipeline_mode = #tpu.pipeline_mode<synchronous>, transform_indices = @transform_9, window_bounds = array<i64: 6, 40>}, {pipeline_mode = #tpu.pipeline_mode<synchronous>, transform_indices = @transform_10, window_bounds = array<i64: 41, 1>}, {transform_indices = @transform_11, window_bounds = array<i64: 1, 2, 1>}]} {
    %c0 = arith.constant 0 : index
    %c0_0 = arith.constant 0 : index
    %0 = vector.load %arg10[%c0, %c0_0] : memref<6x40xf32, #tpu.memory_space<vmem>>, vector<6x40xf32>
    %1 = vector.extract_strided_slice %0 {offsets = [0, 0], sizes = [1, 40], strides = [1, 1]} : vector<6x40xf32> to vector<1x40xf32>
    %2 = vector.extract_strided_slice %0 {offsets = [1, 0], sizes = [1, 40], strides = [1, 1]} : vector<6x40xf32> to vector<1x40xf32>
    %3 = vector.extract_strided_slice %0 {offsets = [2, 0], sizes = [1, 40], strides = [1, 1]} : vector<6x40xf32> to vector<1x40xf32>
    %4 = vector.extract_strided_slice %0 {offsets = [3, 0], sizes = [1, 40], strides = [1, 1]} : vector<6x40xf32> to vector<1x40xf32>
    %5 = vector.extract_strided_slice %0 {offsets = [4, 0], sizes = [1, 40], strides = [1, 1]} : vector<6x40xf32> to vector<1x40xf32>
    %6 = vector.extract_strided_slice %0 {offsets = [5, 0], sizes = [1, 40], strides = [1, 1]} : vector<6x40xf32> to vector<1x40xf32>
    %c0_1 = arith.constant 0 : index
    %c0_2 = arith.constant 0 : index
    %c0_3 = arith.constant 0 : index
    %7 = vector.load %arg1[%c0_1, %c0_2, %c0_3] : memref<2x8x40xf32, #tpu.memory_space<vmem>>, vector<2x8x40xf32>
    %c0_4 = arith.constant 0 : index
    %c0_5 = arith.constant 0 : index
    %8 = vector.load %arg3[%c0_4, %c0_5] : memref<8x40xf32, #tpu.memory_space<vmem>>, vector<8x40xf32>
    %9 = vector.shape_cast %8 : vector<8x40xf32> to vector<1x8x40xf32>
    %10 = vector.broadcast %9 : vector<1x8x40xf32> to vector<2x8x40xf32>
    %11 = arith.addf %7, %10 : vector<2x8x40xf32>
    %12 = vector.shape_cast %11 : vector<2x8x40xf32> to vector<16x40xf32>
    %c0_6 = arith.constant 0 : index
    %c0_7 = arith.constant 0 : index
    %13 = vector.load %arg4[%c0_6, %c0_7] : memref<40x120xf32, #tpu.memory_space<vmem>>, vector<40x120xf32>
    %cst = arith.constant dense<0.000000e+00> : vector<16x120xf32>
    %14 = tpu.matmul %12, %13, %cst {dimension_numbers = #tpu.dot_dimension_numbers<[1], [0], [0], [1], [0, 0, 1, 1], [], []>} : vector<16x40xf32>, vector<40x120xf32>, vector<16x120xf32> -> vector<16x120xf32>
    %c0_8 = arith.constant 0 : index
    %c0_9 = arith.constant 0 : index
    %15 = vector.load %arg5[%c0_8, %c0_9] : memref<1x120xf32, #tpu.memory_space<vmem>>, vector<1x120xf32>
    %16 = vector.broadcast %15 : vector<1x120xf32> to vector<16x120xf32>
    %17 = arith.addf %14, %16 : vector<16x120xf32>
    %18 = vector.shape_cast %17 : vector<16x120xf32> to vector<2x8x120xf32>
    %c0_10 = arith.constant 0 : index
    %c0_11 = arith.constant 0 : index
    %c0_12 = arith.constant 0 : index
    %19 = vector.load %arg2[%c0_10, %c0_11, %c0_12] : memref<2x1x8xf32, #tpu.memory_space<vmem>>, vector<2x1x8xf32>
    %20 = vector.extract_strided_slice %18 {offsets = [0, 0, 0], sizes = [2, 8, 10], strides = [1, 1, 1]} : vector<2x8x120xf32> to vector<2x8x10xf32>
    %21 = vector.extract_strided_slice %18 {offsets = [0, 0, 40], sizes = [2, 8, 10], strides = [1, 1, 1]} : vector<2x8x120xf32> to vector<2x8x10xf32>
    %22 = vector.extract_strided_slice %18 {offsets = [0, 0, 80], sizes = [2, 8, 10], strides = [1, 1, 1]} : vector<2x8x120xf32> to vector<2x8x10xf32>
    "tpu.trace_start"() <{level = 10 : i32, message = "bqd,bkd->bqk"}> : () -> ()
    %cst_13 = arith.constant dense<0.000000e+00> : vector<2x8x8xf32>
    %23 = tpu.matmul %20, %21, %cst_13 {dimension_numbers = #tpu.dot_dimension_numbers<[2], [2], [1], [1], [0, 0, 0, 1, 1, 1], [0], [0]>} : vector<2x8x10xf32>, vector<2x8x10xf32>, vector<2x8x8xf32> -> vector<2x8x8xf32>
    "tpu.trace_stop"() : () -> ()
    %24 = vector.broadcast %19 : vector<2x1x8xf32> to vector<2x8x8xf32>
    %25 = arith.addf %23, %24 : vector<2x8x8xf32>
    %cst_14 = arith.constant dense<0xFF800000> : vector<2x8xf32>
    %26 = vector.multi_reduction <maximumf>, %25, %cst_14 [2] : vector<2x8x8xf32> to vector<2x8xf32>
    %27 = vector.shape_cast %26 : vector<2x8xf32> to vector<2x8x1xf32>
    %28 = vector.broadcast %27 : vector<2x8x1xf32> to vector<2x8x8xf32>
    %29 = arith.subf %25, %28 : vector<2x8x8xf32>
    %30 = math.exp %29 : vector<2x8x8xf32>
    %cst_15 = arith.constant dense<0.000000e+00> : vector<2x8xf32>
    %31 = vector.multi_reduction <add>, %30, %cst_15 [2] : vector<2x8x8xf32> to vector<2x8xf32>
    %32 = vector.shape_cast %31 : vector<2x8xf32> to vector<2x8x1xf32>
    %33 = tpu.reciprocal %32 {approx = true} : vector<2x8x1xf32> -> vector<2x8x1xf32>
    %34 = vector.broadcast %33 : vector<2x8x1xf32> to vector<2x8x8xf32>
    %35 = arith.mulf %30, %34 : vector<2x8x8xf32>
    "tpu.trace_start"() <{level = 10 : i32, message = "bqk,bkd->bqd"}> : () -> ()
    %cst_16 = arith.constant dense<0.000000e+00> : vector<2x8x10xf32>
    %36 = tpu.matmul %35, %22, %cst_16 {dimension_numbers = #tpu.dot_dimension_numbers<[2], [1], [1], [2], [0, 0, 0, 1, 1, 2], [0], [0]>} : vector<2x8x8xf32>, vector<2x8x10xf32>, vector<2x8x10xf32> -> vector<2x8x10xf32>
    "tpu.trace_stop"() : () -> ()
    %37 = vector.extract_strided_slice %18 {offsets = [0, 0, 10], sizes = [2, 8, 10], strides = [1, 1, 1]} : vector<2x8x120xf32> to vector<2x8x10xf32>
    %38 = vector.extract_strided_slice %18 {offsets = [0, 0, 50], sizes = [2, 8, 10], strides = [1, 1, 1]} : vector<2x8x120xf32> to vector<2x8x10xf32>
    %39 = vector.extract_strided_slice %18 {offsets = [0, 0, 90], sizes = [2, 8, 10], strides = [1, 1, 1]} : vector<2x8x120xf32> to vector<2x8x10xf32>
    "tpu.trace_start"() <{level = 10 : i32, message = "bqd,bkd->bqk"}> : () -> ()
    %cst_17 = arith.constant dense<0.000000e+00> : vector<2x8x8xf32>
    %40 = tpu.matmul %37, %38, %cst_17 {dimension_numbers = #tpu.dot_dimension_numbers<[2], [2], [1], [1], [0, 0, 0, 1, 1, 1], [0], [0]>} : vector<2x8x10xf32>, vector<2x8x10xf32>, vector<2x8x8xf32> -> vector<2x8x8xf32>
    "tpu.trace_stop"() : () -> ()
    %41 = vector.broadcast %19 : vector<2x1x8xf32> to vector<2x8x8xf32>
    %42 = arith.addf %40, %41 : vector<2x8x8xf32>
    %cst_18 = arith.constant dense<0xFF800000> : vector<2x8xf32>
    %43 = vector.multi_reduction <maximumf>, %42, %cst_18 [2] : vector<2x8x8xf32> to vector<2x8xf32>
    %44 = vector.shape_cast %43 : vector<2x8xf32> to vector<2x8x1xf32>
    %45 = vector.broadcast %44 : vector<2x8x1xf32> to vector<2x8x8xf32>
    %46 = arith.subf %42, %45 : vector<2x8x8xf32>
    %47 = math.exp %46 : vector<2x8x8xf32>
    %cst_19 = arith.constant dense<0.000000e+00> : vector<2x8xf32>
    %48 = vector.multi_reduction <add>, %47, %cst_19 [2] : vector<2x8x8xf32> to vector<2x8xf32>
    %49 = vector.shape_cast %48 : vector<2x8xf32> to vector<2x8x1xf32>
    %50 = tpu.reciprocal %49 {approx = true} : vector<2x8x1xf32> -> vector<2x8x1xf32>
    %51 = vector.broadcast %50 : vector<2x8x1xf32> to vector<2x8x8xf32>
    %52 = arith.mulf %47, %51 : vector<2x8x8xf32>
    "tpu.trace_start"() <{level = 10 : i32, message = "bqk,bkd->bqd"}> : () -> ()
    %cst_20 = arith.constant dense<0.000000e+00> : vector<2x8x10xf32>
    %53 = tpu.matmul %52, %39, %cst_20 {dimension_numbers = #tpu.dot_dimension_numbers<[2], [1], [1], [2], [0, 0, 0, 1, 1, 2], [0], [0]>} : vector<2x8x8xf32>, vector<2x8x10xf32>, vector<2x8x10xf32> -> vector<2x8x10xf32>
    "tpu.trace_stop"() : () -> ()
    %54 = vector.extract_strided_slice %18 {offsets = [0, 0, 20], sizes = [2, 8, 10], strides = [1, 1, 1]} : vector<2x8x120xf32> to vector<2x8x10xf32>
    %55 = vector.extract_strided_slice %18 {offsets = [0, 0, 60], sizes = [2, 8, 10], strides = [1, 1, 1]} : vector<2x8x120xf32> to vector<2x8x10xf32>
    %56 = vector.extract_strided_slice %18 {offsets = [0, 0, 100], sizes = [2, 8, 10], strides = [1, 1, 1]} : vector<2x8x120xf32> to vector<2x8x10xf32>
    "tpu.trace_start"() <{level = 10 : i32, message = "bqd,bkd->bqk"}> : () -> ()
    %cst_21 = arith.constant dense<0.000000e+00> : vector<2x8x8xf32>
    %57 = tpu.matmul %54, %55, %cst_21 {dimension_numbers = #tpu.dot_dimension_numbers<[2], [2], [1], [1], [0, 0, 0, 1, 1, 1], [0], [0]>} : vector<2x8x10xf32>, vector<2x8x10xf32>, vector<2x8x8xf32> -> vector<2x8x8xf32>
    "tpu.trace_stop"() : () -> ()
    %58 = vector.broadcast %19 : vector<2x1x8xf32> to vector<2x8x8xf32>
    %59 = arith.addf %57, %58 : vector<2x8x8xf32>
    %cst_22 = arith.constant dense<0xFF800000> : vector<2x8xf32>
    %60 = vector.multi_reduction <maximumf>, %59, %cst_22 [2] : vector<2x8x8xf32> to vector<2x8xf32>
    %61 = vector.shape_cast %60 : vector<2x8xf32> to vector<2x8x1xf32>
    %62 = vector.broadcast %61 : vector<2x8x1xf32> to vector<2x8x8xf32>
    %63 = arith.subf %59, %62 : vector<2x8x8xf32>
    %64 = math.exp %63 : vector<2x8x8xf32>
    %cst_23 = arith.constant dense<0.000000e+00> : vector<2x8xf32>
    %65 = vector.multi_reduction <add>, %64, %cst_23 [2] : vector<2x8x8xf32> to vector<2x8xf32>
    %66 = vector.shape_cast %65 : vector<2x8xf32> to vector<2x8x1xf32>
    %67 = tpu.reciprocal %66 {approx = true} : vector<2x8x1xf32> -> vector<2x8x1xf32>
    %68 = vector.broadcast %67 : vector<2x8x1xf32> to vector<2x8x8xf32>
    %69 = arith.mulf %64, %68 : vector<2x8x8xf32>
    "tpu.trace_start"() <{level = 10 : i32, message = "bqk,bkd->bqd"}> : () -> ()
    %cst_24 = arith.constant dense<0.000000e+00> : vector<2x8x10xf32>
    %70 = tpu.matmul %69, %56, %cst_24 {dimension_numbers = #tpu.dot_dimension_numbers<[2], [1], [1], [2], [0, 0, 0, 1, 1, 2], [0], [0]>} : vector<2x8x8xf32>, vector<2x8x10xf32>, vector<2x8x10xf32> -> vector<2x8x10xf32>
    "tpu.trace_stop"() : () -> ()
    %71 = vector.extract_strided_slice %18 {offsets = [0, 0, 30], sizes = [2, 8, 10], strides = [1, 1, 1]} : vector<2x8x120xf32> to vector<2x8x10xf32>
    %72 = vector.extract_strided_slice %18 {offsets = [0, 0, 70], sizes = [2, 8, 10], strides = [1, 1, 1]} : vector<2x8x120xf32> to vector<2x8x10xf32>
    %73 = vector.extract_strided_slice %18 {offsets = [0, 0, 110], sizes = [2, 8, 10], strides = [1, 1, 1]} : vector<2x8x120xf32> to vector<2x8x10xf32>
    "tpu.trace_start"() <{level = 10 : i32, message = "bqd,bkd->bqk"}> : () -> ()
    %cst_25 = arith.constant dense<0.000000e+00> : vector<2x8x8xf32>
    %74 = tpu.matmul %71, %72, %cst_25 {dimension_numbers = #tpu.dot_dimension_numbers<[2], [2], [1], [1], [0, 0, 0, 1, 1, 1], [0], [0]>} : vector<2x8x10xf32>, vector<2x8x10xf32>, vector<2x8x8xf32> -> vector<2x8x8xf32>
    "tpu.trace_stop"() : () -> ()
    %75 = vector.broadcast %19 : vector<2x1x8xf32> to vector<2x8x8xf32>
    %76 = arith.addf %74, %75 : vector<2x8x8xf32>
    %cst_26 = arith.constant dense<0xFF800000> : vector<2x8xf32>
    %77 = vector.multi_reduction <maximumf>, %76, %cst_26 [2] : vector<2x8x8xf32> to vector<2x8xf32>
    %78 = vector.shape_cast %77 : vector<2x8xf32> to vector<2x8x1xf32>
    %79 = vector.broadcast %78 : vector<2x8x1xf32> to vector<2x8x8xf32>
    %80 = arith.subf %76, %79 : vector<2x8x8xf32>
    %81 = math.exp %80 : vector<2x8x8xf32>
    %cst_27 = arith.constant dense<0.000000e+00> : vector<2x8xf32>
    %82 = vector.multi_reduction <add>, %81, %cst_27 [2] : vector<2x8x8xf32> to vector<2x8xf32>
    %83 = vector.shape_cast %82 : vector<2x8xf32> to vector<2x8x1xf32>
    %84 = tpu.reciprocal %83 {approx = true} : vector<2x8x1xf32> -> vector<2x8x1xf32>
    %85 = vector.broadcast %84 : vector<2x8x1xf32> to vector<2x8x8xf32>
    %86 = arith.mulf %81, %85 : vector<2x8x8xf32>
    "tpu.trace_start"() <{level = 10 : i32, message = "bqk,bkd->bqd"}> : () -> ()
    %cst_28 = arith.constant dense<0.000000e+00> : vector<2x8x10xf32>
    %87 = tpu.matmul %86, %73, %cst_28 {dimension_numbers = #tpu.dot_dimension_numbers<[2], [1], [1], [2], [0, 0, 0, 1, 1, 2], [0], [0]>} : vector<2x8x8xf32>, vector<2x8x10xf32>, vector<2x8x10xf32> -> vector<2x8x10xf32>
    "tpu.trace_stop"() : () -> ()
    %88 = tpu.concatenate %36, %53, %70, %87 in 2 : vector<2x8x10xf32>, vector<2x8x10xf32>, vector<2x8x10xf32>, vector<2x8x10xf32> -> vector<2x8x40xf32>
    %89 = vector.shape_cast %88 : vector<2x8x40xf32> to vector<16x40xf32>
    %c0_29 = arith.constant 0 : index
    %c0_30 = arith.constant 0 : index
    %90 = vector.load %arg6[%c0_29, %c0_30] : memref<40x40xf32, #tpu.memory_space<vmem>>, vector<40x40xf32>
    %cst_31 = arith.constant dense<0.000000e+00> : vector<16x40xf32>
    %91 = tpu.matmul %89, %90, %cst_31 {dimension_numbers = #tpu.dot_dimension_numbers<[1], [0], [0], [1], [0, 0, 1, 1], [], []>} : vector<16x40xf32>, vector<40x40xf32>, vector<16x40xf32> -> vector<16x40xf32>
    %92 = vector.broadcast %1 : vector<1x40xf32> to vector<16x40xf32>
    %93 = arith.addf %91, %92 : vector<16x40xf32>
    %94 = arith.addf %12, %93 : vector<16x40xf32>
    %cst_32 = arith.constant dense<0.000000e+00> : vector<16xf32>
    %95 = vector.multi_reduction <add>, %94, %cst_32 [1] : vector<16x40xf32> to vector<16xf32>
    %96 = vector.shape_cast %95 : vector<16xf32> to vector<16x1xf32>
    %cst_33 = arith.constant 2.500000e-02 : f32
    %97 = vector.broadcast %cst_33 : f32 to vector<16x1xf32>
    %98 = arith.mulf %96, %97 : vector<16x1xf32>
    %99 = vector.broadcast %98 : vector<16x1xf32> to vector<16x40xf32>
    %100 = arith.subf %94, %99 : vector<16x40xf32>
    %101 = arith.mulf %100, %100 : vector<16x40xf32>
    %cst_34 = arith.constant dense<0.000000e+00> : vector<16xf32>
    %102 = vector.multi_reduction <add>, %101, %cst_34 [1] : vector<16x40xf32> to vector<16xf32>
    %103 = vector.shape_cast %102 : vector<16xf32> to vector<16x1xf32>
    %cst_35 = arith.constant 2.500000e-02 : f32
    %104 = vector.broadcast %cst_35 : f32 to vector<16x1xf32>
    %105 = arith.mulf %103, %104 : vector<16x1xf32>
    %106 = vector.broadcast %98 : vector<16x1xf32> to vector<16x40xf32>
    %107 = arith.subf %94, %106 : vector<16x40xf32>
    %cst_36 = arith.constant 9.99999974E-6 : f32
    %108 = vector.broadcast %cst_36 : f32 to vector<16x1xf32>
    %109 = arith.addf %105, %108 : vector<16x1xf32>
    %110 = math.rsqrt %109 : vector<16x1xf32>
    %111 = vector.broadcast %110 : vector<16x1xf32> to vector<16x40xf32>
    %112 = arith.mulf %107, %111 : vector<16x40xf32>
    %113 = vector.broadcast %2 : vector<1x40xf32> to vector<16x40xf32>
    %114 = arith.mulf %112, %113 : vector<16x40xf32>
    %115 = vector.broadcast %3 : vector<1x40xf32> to vector<16x40xf32>
    %116 = arith.addf %114, %115 : vector<16x40xf32>
    %c0_37 = arith.constant 0 : index
    %c0_38 = arith.constant 0 : index
    %117 = vector.load %arg7[%c0_37, %c0_38] : memref<40x160xf32, #tpu.memory_space<vmem>>, vector<40x160xf32>
    %cst_39 = arith.constant dense<0.000000e+00> : vector<16x160xf32>
    %118 = tpu.matmul %116, %117, %cst_39 {dimension_numbers = #tpu.dot_dimension_numbers<[1], [0], [0], [1], [0, 0, 1, 1], [], []>} : vector<16x40xf32>, vector<40x160xf32>, vector<16x160xf32> -> vector<16x160xf32>
    %c0_40 = arith.constant 0 : index
    %c0_41 = arith.constant 0 : index
    %119 = vector.load %arg8[%c0_40, %c0_41] : memref<1x160xf32, #tpu.memory_space<vmem>>, vector<1x160xf32>
    %120 = vector.broadcast %119 : vector<1x160xf32> to vector<16x160xf32>
    %121 = arith.addf %118, %120 : vector<16x160xf32>
    %cst_42 = arith.constant 0.000000e+00 : f32
    %122 = vector.broadcast %cst_42 : f32 to vector<16x160xf32>
    %123 = arith.maximumf %121, %122 : vector<16x160xf32>
    %c0_43 = arith.constant 0 : index
    %c0_44 = arith.constant 0 : index
    %124 = vector.load %arg9[%c0_43, %c0_44] : memref<160x40xf32, #tpu.memory_space<vmem>>, vector<160x40xf32>
    %cst_45 = arith.constant dense<0.000000e+00> : vector<16x40xf32>
    %125 = tpu.matmul %123, %124, %cst_45 {dimension_numbers = #tpu.dot_dimension_numbers<[1], [0], [0], [1], [0, 0, 1, 1], [], []>} : vector<16x160xf32>, vector<160x40xf32>, vector<16x40xf32> -> vector<16x40xf32>
    %126 = vector.broadcast %4 : vector<1x40xf32> to vector<16x40xf32>
    %127 = arith.addf %125, %126 : vector<16x40xf32>
    %128 = arith.addf %116, %127 : vector<16x40xf32>
    %cst_46 = arith.constant dense<0.000000e+00> : vector<16xf32>
    %129 = vector.multi_reduction <add>, %128, %cst_46 [1] : vector<16x40xf32> to vector<16xf32>
    %130 = vector.shape_cast %129 : vector<16xf32> to vector<16x1xf32>
    %cst_47 = arith.constant 2.500000e-02 : f32
    %131 = vector.broadcast %cst_47 : f32 to vector<16x1xf32>
    %132 = arith.mulf %130, %131 : vector<16x1xf32>
    %133 = vector.broadcast %132 : vector<16x1xf32> to vector<16x40xf32>
    %134 = arith.subf %128, %133 : vector<16x40xf32>
    %135 = arith.mulf %134, %134 : vector<16x40xf32>
    %cst_48 = arith.constant dense<0.000000e+00> : vector<16xf32>
    %136 = vector.multi_reduction <add>, %135, %cst_48 [1] : vector<16x40xf32> to vector<16xf32>
    %137 = vector.shape_cast %136 : vector<16xf32> to vector<16x1xf32>
    %cst_49 = arith.constant 2.500000e-02 : f32
    %138 = vector.broadcast %cst_49 : f32 to vector<16x1xf32>
    %139 = arith.mulf %137, %138 : vector<16x1xf32>
    %140 = vector.broadcast %132 : vector<16x1xf32> to vector<16x40xf32>
    %141 = arith.subf %128, %140 : vector<16x40xf32>
    %cst_50 = arith.constant 9.99999974E-6 : f32
    %142 = vector.broadcast %cst_50 : f32 to vector<16x1xf32>
    %143 = arith.addf %139, %142 : vector<16x1xf32>
    %144 = math.rsqrt %143 : vector<16x1xf32>
    %145 = vector.broadcast %144 : vector<16x1xf32> to vector<16x40xf32>
    %146 = arith.mulf %141, %145 : vector<16x40xf32>
    %147 = vector.broadcast %5 : vector<1x40xf32> to vector<16x40xf32>
    %148 = arith.mulf %146, %147 : vector<16x40xf32>
    %149 = vector.broadcast %6 : vector<1x40xf32> to vector<16x40xf32>
    %150 = arith.addf %148, %149 : vector<16x40xf32>
    %151 = vector.shape_cast %150 : vector<16x40xf32> to vector<2x8x40xf32>
    %cst_51 = arith.constant dense<0.000000e+00> : vector<2x40xf32>
    %152 = vector.multi_reduction <add>, %151, %cst_51 [1] : vector<2x8x40xf32> to vector<2x40xf32>
    %cst_52 = arith.constant 1.250000e-01 : f32
    %153 = vector.broadcast %cst_52 : f32 to vector<2x40xf32>
    %154 = arith.mulf %152, %153 : vector<2x40xf32>
    %c0_53 = arith.constant 0 : index
    %c0_54 = arith.constant 0 : index
    %155 = vector.load %arg11[%c0_53, %c0_54] : memref<41x1xf32, #tpu.memory_space<vmem>>, vector<41x1xf32>
    %156 = vector.extract_strided_slice %155 {offsets = [0, 0], sizes = [40, 1], strides = [1, 1]} : vector<41x1xf32> to vector<40x1xf32>
    %cst_55 = arith.constant dense<0.000000e+00> : vector<2x1xf32>
    %157 = tpu.matmul %154, %156, %cst_55 {dimension_numbers = #tpu.dot_dimension_numbers<[1], [0], [0], [1], [0, 0, 1, 1], [], []>} : vector<2x40xf32>, vector<40x1xf32>, vector<2x1xf32> -> vector<2x1xf32>
    %158 = vector.extract_strided_slice %155 {offsets = [40, 0], sizes = [1, 1], strides = [1, 1]} : vector<41x1xf32> to vector<1x1xf32>
    %159 = vector.broadcast %158 : vector<1x1xf32> to vector<2x1xf32>
    %160 = arith.addf %157, %159 : vector<2x1xf32>
    %c0_56 = arith.constant 0 : index
    %c0_57 = arith.constant 0 : index
    %c0_58 = arith.constant 0 : index
    %161 = vector.load %arg12[%c0_56, %c0_57, %c0_58] : memref<1x2x1xf32, #tpu.memory_space<vmem>>, vector<1x2x1xf32>
    %162 = vector.shape_cast %161 : vector<1x2x1xf32> to vector<2x1xf32>
    %163 = vector.shape_cast %160 : vector<2x1xf32> to vector<1x2x1xf32>
    tpu.vector_store %arg12[%c0_56, %c0_57, %c0_58], %163 {strides = array<i32>} : memref<1x2x1xf32, #tpu.memory_space<vmem>>, vector<1x2x1xf32>,
    return
  }
  func.func @transform_0(%arg0: i32) -> (i32, i32, i32) {
    %c0_i32 = arith.constant 0 : i32
    %c0_i32_0 = arith.constant 0 : i32
    %c0_i32_1 = arith.constant 0 : i32
    return %arg0, %c0_i32, %c0_i32_0 : i32, i32, i32
  }
  func.func @transform_1(%arg0: i32) -> (i32, i32, i32) {
    %c0_i32 = arith.constant 0 : i32
    %c0_i32_0 = arith.constant 0 : i32
    %c0_i32_1 = arith.constant 0 : i32
    return %arg0, %c0_i32, %c0_i32_0 : i32, i32, i32
  }
  func.func @transform_2(%arg0: i32) -> (i32, i32) {
    %c0_i32 = arith.constant 0 : i32
    %c0_i32_0 = arith.constant 0 : i32
    %c0_i32_1 = arith.constant 0 : i32
    return %c0_i32, %c0_i32_0 : i32, i32
  }
  func.func @transform_3(%arg0: i32) -> (i32, i32) {
    %c0_i32 = arith.constant 0 : i32
    %c0_i32_0 = arith.constant 0 : i32
    %c0_i32_1 = arith.constant 0 : i32
    return %c0_i32, %c0_i32_0 : i32, i32
  }
  func.func @transform_4(%arg0: i32) -> (i32, i32) {
    %c0_i32 = arith.constant 0 : i32
    %c0_i32_0 = arith.constant 0 : i32
    %c0_i32_1 = arith.constant 0 : i32
    return %c0_i32, %c0_i32_0 : i32, i32
  }
  func.func @transform_5(%arg0: i32) -> (i32, i32) {
    %c0_i32 = arith.constant 0 : i32
    %c0_i32_0 = arith.constant 0 : i32
    %c0_i32_1 = arith.constant 0 : i32
    return %c0_i32, %c0_i32_0 : i32, i32
  }
  func.func @transform_6(%arg0: i32) -> (i32, i32) {
    %c0_i32 = arith.constant 0 : i32
    %c0_i32_0 = arith.constant 0 : i32
    %c0_i32_1 = arith.constant 0 : i32
    return %c0_i32, %c0_i32_0 : i32, i32
  }
  func.func @transform_7(%arg0: i32) -> (i32, i32) {
    %c0_i32 = arith.constant 0 : i32
    %c0_i32_0 = arith.constant 0 : i32
    %c0_i32_1 = arith.constant 0 : i32
    return %c0_i32, %c0_i32_0 : i32, i32
  }
  func.func @transform_8(%arg0: i32) -> (i32, i32) {
    %c0_i32 = arith.constant 0 : i32
    %c0_i32_0 = arith.constant 0 : i32
    %c0_i32_1 = arith.constant 0 : i32
    return %c0_i32, %c0_i32_0 : i32, i32
  }
  func.func @transform_9(%arg0: i32) -> (i32, i32) {
    %c0_i32 = arith.constant 0 : i32
    %c0_i32_0 = arith.constant 0 : i32
    %c0_i32_1 = arith.constant 0 : i32
    return %c0_i32, %c0_i32_0 : i32, i32
  }
  func.func @transform_10(%arg0: i32) -> (i32, i32) {
    %c0_i32 = arith.constant 0 : i32
    %c0_i32_0 = arith.constant 0 : i32
    %c0_i32_1 = arith.constant 0 : i32
    return %c0_i32, %c0_i32_0 : i32, i32
  }
  func.func @transform_11(%arg0: i32) -> (i32, i32, i32) {
    %c0_i32 = arith.constant 0 : i32
    %c0_i32_0 = arith.constant 0 : i32
    %c0_i32_1 = arith.constant 0 : i32
    return %arg0, %c0_i32, %c0_i32_0 : i32, i32, i32
  }
}

</mosaic_0001>

<llo_original>
// kernel: tpu_custom_call.1
$region0: #{tpu_custom_call.1}
  #allocation0 [shape = 'u32[]', space=smem, size = 0x4, offset = 0x4, fixed_abs, tag = 'smem constant byte address 0x4 - core index']
  #allocation1 [shape = 'u32[144,128]{1,0:T(1,128)}', space=vmem, size = 0x12000, scoped, tag = 'internal scratch']
  %s0 = inlined_call_operand.vmem [shape: f32[2,8,40], index: 0, kind: input, shape index: {}]
  %s1 = inlined_call_operand.vmem [shape: f32[2,1,8], index: 1, kind: input, shape index: {}]
  %s2 = inlined_call_operand.vmem [shape: f32[8,40], index: 2, kind: input, shape index: {}]
  %s3 = inlined_call_operand.vmem [shape: f32[40,120], index: 3, kind: input, shape index: {}]
  %s4 = inlined_call_operand.vmem [shape: f32[1,120], index: 4, kind: input, shape index: {}]
  %s5 = inlined_call_operand.vmem [shape: f32[40,40], index: 5, kind: input, shape index: {}]
  %s6 = inlined_call_operand.vmem [shape: f32[40,160], index: 6, kind: input, shape index: {}]
  %s7 = inlined_call_operand.vmem [shape: f32[1,160], index: 7, kind: input, shape index: {}]
  %s8 = inlined_call_operand.vmem [shape: f32[160,40], index: 8, kind: input, shape index: {}]
  %s9 = inlined_call_operand.vmem [shape: f32[6,40], index: 9, kind: input, shape index: {}]
  %s10 = inlined_call_operand.vmem [shape: f32[41,1], index: 10, kind: input, shape index: {}]
  %s11 = inlined_call_operand.vmem [shape: f32[1,2,1], index: 11, kind: output, shape index: {}]
  %s12 = sld [smem:[#allocation0]]
  $region54: #{tpu_custom_call.1} parent=0
    _
  %s14 = ssub.s32 1, %s12
  %s15 = scalar_select 0, %s14, %s12
  // Predicated region
  $region2: #{tpu_custom_call.1} parent=0 // pred_check
    _
  $region3: #{tpu_custom_call.1} parent=0 // pred_check_branch
    %17 = sbr.rel (0) target = $region5
  $region4: #{tpu_custom_call.1} parent=0 // pred_region
    _
  $region5: #{tpu_custom_call.1} parent=0 // pred_fallthru
    _
  // Predicated region
  $region6: #{tpu_custom_call.1} parent=0 // pred_check
    _
  $region7: #{tpu_custom_call.1} parent=0 // pred_check_branch
    %19 = sbr.rel (0) target = $region9
  $region8: #{tpu_custom_call.1} parent=0 // pred_region
    _
  $region9: #{tpu_custom_call.1} parent=0 // pred_fallthru
    _
  // Predicated region
  $region10: #{tpu_custom_call.1} parent=0 // pred_check
    _
  $region11: #{tpu_custom_call.1} parent=0 // pred_check_branch
    %21 = sbr.rel (0) target = $region13
  $region12: #{tpu_custom_call.1} parent=0 // pred_region
    _
  $region13: #{tpu_custom_call.1} parent=0 // pred_fallthru
    _
  // Predicated region
  $region14: #{tpu_custom_call.1} parent=0 // pred_check
    _
  $region15: #{tpu_custom_call.1} parent=0 // pred_check_branch
    %23 = sbr.rel (0) target = $region17
  $region16: #{tpu_custom_call.1} parent=0 // pred_region
    _
  $region17: #{tpu_custom_call.1} parent=0 // pred_fallthru
    _
  // Predicated region
  $region18: #{tpu_custom_call.1} parent=0 // pred_check
    _
  $region19: #{tpu_custom_call.1} parent=0 // pred_check_branch
    %25 = sbr.rel (0) target = $region21
  $region20: #{tpu_custom_call.1} parent=0 // pred_region
    _
  $region21: #{tpu_custom_call.1} parent=0 // pred_fallthru
    _
  // Predicated region
  $region22: #{tpu_custom_call.1} parent=0 // pred_check
    _
  $region23: #{tpu_custom_call.1} parent=0 // pred_check_branch
    %27 = sbr.rel (0) target = $region25
  $region24: #{tpu_custom_call.1} parent=0 // pred_region
    _
  $region25: #{tpu_custom_call.1} parent=0 // pred_fallthru
    _
  // Predicated region
  $region26: #{tpu_custom_call.1} parent=0 // pred_check
    _
  $region27: #{tpu_custom_call.1} parent=0 // pred_check_branch
    %29 = sbr.rel (0) target = $region29
  $region28: #{tpu_custom_call.1} parent=0 // pred_region
    _
  $region29: #{tpu_custom_call.1} parent=0 // pred_fallthru
    _
  // Predicated region
  $region30: #{tpu_custom_call.1} parent=0 // pred_check
    _
  $region31: #{tpu_custom_call.1} parent=0 // pred_check_branch
    %31 = sbr.rel (0) target = $region33
  $region32: #{tpu_custom_call.1} parent=0 // pred_region
    _
  $region33: #{tpu_custom_call.1} parent=0 // pred_fallthru
    _
  // Predicated region
  $region34: #{tpu_custom_call.1} parent=0 // pred_check
    _
  $region35: #{tpu_custom_call.1} parent=0 // pred_check_branch
    %33 = sbr.rel (0) target = $region37
  $region36: #{tpu_custom_call.1} parent=0 // pred_region
    _
  $region37: #{tpu_custom_call.1} parent=0 // pred_fallthru
    _
  // Predicated region
  $region38: #{tpu_custom_call.1} parent=0 // pred_check
    _
  $region39: #{tpu_custom_call.1} parent=0 // pred_check_branch
    %35 = sbr.rel (0) target = $region41
  $region40: #{tpu_custom_call.1} parent=0 // pred_region
    _
  $region41: #{tpu_custom_call.1} parent=0 // pred_fallthru
    _
  // Predicated region
  $region42: #{tpu_custom_call.1} parent=0 // pred_check
    _
  $region43: #{tpu_custom_call.1} parent=0 // pred_check_branch
    %37 = sbr.rel (0) target = $region45
  $region44: #{tpu_custom_call.1} parent=0 // pred_region
    _
  $region45: #{tpu_custom_call.1} parent=0 // pred_fallthru
    _
  %v38 = vld [vmem:[%s9] sm:$0x3f]
  %v39 = vld [vmem:[%s0] sm:$0xff]
  %v40 = vld [vmem:[%s0 + $0x8] sm:$0xff]
  %v41 = vld [vmem:[%s2] sm:$0xff]
  %v42 = vadd.f32 %v39, %v41
  %v43 = vadd.f32 %v40, %v41
  %v44 = vld [vmem:[%s3] sm:$0xff]
  %v45 = vld [vmem:[%s3 + $0x8] sm:$0xff]
  %v46 = vld [vmem:[%s3 + $0x10] sm:$0xff]
  %v47 = vld [vmem:[%s3 + $0x18] sm:$0xff]
  %v48 = vld [vmem:[%s3 + $0x20] sm:$0xff]
  %v49 = vld [vmem:[%s4] sm:$0x1]
  %v51 = vlaneseq
  %v52 = vshrl.u32 %v51, 7
  %v53 = vsub.s32 0, %v52
  %v54 = vrot.slane %v49, %v53
  %vm56 = vcmask 326656
  %v58 = vsel %vm56, %v42, 0
  %v61 = vsel %vm56, %v43, 0
  %63 = vmatprep.subr.mxu0 0.0
  %64 = vmatpush1.msra.mxu0 0.0
  %65 = vmatprep.subr.mxu0 0.0
  %66 = vmatpush1.msra.mxu0 0.0
  %67 = vmatprep.subr.mxu0 0.0
  %68 = vmatpush1.msra.mxu0 0.0
  %69 = vmatprep.subr.mxu0 0.0
  %70 = vmatpush1.msra.mxu0 0.0
  %71 = vmatprep.subr.mxu0 0.0
  %72 = vmatpush1.msra.mxu0 0.0
  %73 = vmatprep.subr.mxu0 0.0
  %74 = vmatpush1.msra.mxu0 0.0
  %75 = vmatprep.subr.mxu0 0.0
  %76 = vmatpush1.msra.mxu0 0.0
  %77 = vmatprep.subr.mxu0 0.0
  %78 = vmatpush1.msra.mxu0 0.0
  %79 = vmatprep.subr.mxu0 0.0
  %80 = vmatpush1.msra.mxu0 0.0
  %81 = vmatprep.subr.mxu0 0.0
  %82 = vmatpush1.msra.mxu0 0.0
  %83 = vmatprep.subr.mxu0 0.0
  %84 = vmatpush1.msra.mxu0 0.0
  %85 = vmatprep.subr.mxu0 0.0
  %86 = vmatpush1.msra.mxu0 %v48
  %87 = vmatprep.subr.mxu0 0.0
  %88 = vmatpush1.msra.mxu0 %v47
  %89 = vmatprep.subr.mxu0 0.0
  %90 = vmatpush1.msra.mxu0 %v46
  %91 = vmatprep.subr.mxu0 0.0
  %92 = vmatpush1.msra.mxu0 %v45
  %93 = vmatprep.subr.mxu0 0.0
  %94 = vmatpush1.msra.mxu0 %v44
  %95 = vmatprep.subr.mxu0 0.0
  %96 = vmatpush2.msra.mxu0 0.0
  %97 = vmatprep.subr.mxu0 0.0
  %98 = vmatpush2.msra.mxu0 0.0
  %99 = vmatprep.subr.mxu0 0.0
  %100 = vmatpush2.msra.mxu0 0.0
  %101 = vmatprep.subr.mxu0 0.0
  %102 = vmatpush2.msra.mxu0 0.0
  %103 = vmatprep.subr.mxu0 0.0
  %104 = vmatpush2.msra.mxu0 0.0
  %105 = vmatprep.subr.mxu0 0.0
  %106 = vmatpush2.msra.mxu0 0.0
  %107 = vmatprep.subr.mxu0 0.0
  %108 = vmatpush2.msra.mxu0 0.0
  %109 = vmatprep.subr.mxu0 0.0
  %110 = vmatpush2.msra.mxu0 0.0
  %111 = vmatprep.subr.mxu0 0.0
  %112 = vmatpush2.msra.mxu0 0.0
  %113 = vmatprep.subr.mxu0 0.0
  %114 = vmatpush2.msra.mxu0 0.0
  %115 = vmatprep.subr.mxu0 0.0
  %116 = vmatpush2.msra.mxu0 0.0
  %117 = vmatprep.subr.mxu0 0.0
  %118 = vmatpush2.msra.mxu0 0.0
  %119 = vmatprep.subr.mxu0 0.0
  %120 = vmatpush2.msra.mxu0 0.0
  %121 = vmatprep.subr.mxu0 0.0
  %122 = vmatpush2.msra.mxu0 0.0
  %123 = vmatprep.subr.mxu0 0.0
  %124 = vmatpush2.msra.mxu0 0.0
  %125 = vmatprep.subr.mxu0 0.0
  %126 = vmatpush2.msra.mxu0 0.0
  %127 = vmatprep.mubr.f32.mxu0 0.0
  %128 = vmatmul.mubr.f32.gmra.mxu0 %v58
  %v129 = vpop.f32.mrf.mxu0
  %v130 = vadd.f32 %v54, %v129
  %v131 = vpop.f32.mrf.mxu0
  %132 = vmatprep.mubr.f32.mxu0 0.0
  %133 = vmatmul.mubr.f32.gmra.mxu0 %v61
  %v134 = vpop.f32.mrf.mxu0
  %v135 = vadd.f32 %v54, %v134
  %v136 = vpop.f32.mrf.mxu0
  %137 = vdwg.mxu0
  %v138 = vld [vmem:[%s1] sm:$0x1]
  %v139 = vld [vmem:[%s1 + $0x1] sm:$0x1]
  %v142 = vlaneseq
  %v143 = vshrl.u32 %v142, 7
  %v144 = vsub.s32 0, %v143
  %v145 = vrot.slane %v138, %v144
  %v146 = vlaneseq
  %v147 = vshrl.u32 %v146, 7
  %v148 = vsub.s32 0, %v147
  %v149 = vrot.slane %v139, %v148
  %153 = vrot.lane.b32.xlu0 %v130, 88
  %v154 = vpop.permute.xlu0 %153
  %vm155 = vcmask 80896
  %v156 = vsel %vm155, %v130, 0
  %v158 = vsel %vm155, %v154, 0
  %160 = vmatprep.subr.mxu0 0.0
  %161 = vmatpush1.xpose.msra.mxu0 0.0
  %162 = vmatprep.subr.mxu0 0.0
  %163 = vmatpush1.xpose.msra.mxu0 0.0
  %164 = vmatprep.subr.mxu0 0.0
  %165 = vmatpush1.xpose.msra.mxu0 0.0
  %166 = vmatprep.subr.mxu0 0.0
  %167 = vmatpush1.xpose.msra.mxu0 0.0
  %168 = vmatprep.subr.mxu0 0.0
  %169 = vmatpush1.xpose.msra.mxu0 0.0
  %170 = vmatprep.subr.mxu0 0.0
  %171 = vmatpush1.xpose.msra.mxu0 0.0
  %172 = vmatprep.subr.mxu0 0.0
  %173 = vmatpush1.xpose.msra.mxu0 0.0
  %174 = vmatprep.subr.mxu0 0.0
  %175 = vmatpush1.xpose.msra.mxu0 0.0
  %176 = vmatprep.subr.mxu0 0.0
  %177 = vmatpush1.xpose.msra.mxu0 0.0
  %178 = vmatprep.subr.mxu0 0.0
  %179 = vmatpush1.xpose.msra.mxu0 0.0
  %180 = vmatprep.subr.mxu0 0.0
  %181 = vmatpush1.xpose.msra.mxu0 0.0
  %182 = vmatprep.subr.mxu0 0.0
  %183 = vmatpush1.xpose.msra.mxu0 0.0
  %184 = vmatprep.subr.mxu0 0.0
  %185 = vmatpush1.xpose.msra.mxu0 0.0
  %186 = vmatprep.subr.mxu0 0.0
  %187 = vmatpush1.xpose.msra.mxu0 0.0
  %188 = vmatprep.subr.mxu0 0.0
  %189 = vmatpush1.xpose.msra.mxu0 0.0
  %190 = vmatprep.subr.mxu0 0.0
  %191 = vmatpush1.xpose.msra.mxu0 %v158
  %192 = vmatprep.subr.mxu0 0.0
  %193 = vmatpush2.xpose.msra.mxu0 0.0
  %194 = vmatprep.subr.mxu0 0.0
  %195 = vmatpush2.xpose.msra.mxu0 0.0
  %196 = vmatprep.subr.mxu0 0.0
  %197 = vmatpush2.xpose.msra.mxu0 0.0
  %198 = vmatprep.subr.mxu0 0.0
  %199 = vmatpush2.xpose.msra.mxu0 0.0
  %200 = vmatprep.subr.mxu0 0.0
  %201 = vmatpush2.xpose.msra.mxu0 0.0
  %202 = vmatprep.subr.mxu0 0.0
  %203 = vmatpush2.xpose.msra.mxu0 0.0
  %204 = vmatprep.subr.mxu0 0.0
  %205 = vmatpush2.xpose.msra.mxu0 0.0
  %206 = vmatprep.subr.mxu0 0.0
  %207 = vmatpush2.xpose.msra.mxu0 0.0
  %208 = vmatprep.subr.mxu0 0.0
  %209 = vmatpush2.xpose.msra.mxu0 0.0
  %210 = vmatprep.subr.mxu0 0.0
  %211 = vmatpush2.xpose.msra.mxu0 0.0
  %212 = vmatprep.subr.mxu0 0.0
  %213 = vmatpush2.xpose.msra.mxu0 0.0
  %214 = vmatprep.subr.mxu0 0.0
  %215 = vmatpush2.xpose.msra.mxu0 0.0
  %216 = vmatprep.subr.mxu0 0.0
  %217 = vmatpush2.xpose.msra.mxu0 0.0
  %218 = vmatprep.subr.mxu0 0.0
  %219 = vmatpush2.xpose.msra.mxu0 0.0
  %220 = vmatprep.subr.mxu0 0.0
  %221 = vmatpush2.xpose.msra.mxu0 0.0
  %222 = vmatprep.subr.mxu0 0.0
  %223 = vmatpush2.xpose.msra.mxu0 0.0
  %224 = vmatprep.mubr.f32.mxu0 0.0
  %225 = vmatmul.mubr.f32.gmra.mxu0 %v156
  %v226 = vpop.f32.mrf.mxu0
  %v227 = vadd.f32 %v145, %v226
  %v228 = vpop.f32.mrf.mxu0
  %229 = vdwg.mxu0
  %231 = vrot.lane.b32.xlu0 %v135, 88
  %v232 = vpop.permute.xlu0 %231
  %v233 = vsel %vm155, %v135, 0
  %v235 = vsel %vm155, %v232, 0
  %237 = vmatprep.subr.mxu0 0.0
  %238 = vmatpush1.xpose.msra.mxu0 0.0
  %239 = vmatprep.subr.mxu0 0.0
  %240 = vmatpush1.xpose.msra.mxu0 0.0
  %241 = vmatprep.subr.mxu0 0.0
  %242 = vmatpush1.xpose.msra.mxu0 0.0
  %243 = vmatprep.subr.mxu0 0.0
  %244 = vmatpush1.xpose.msra.mxu0 0.0
  %245 = vmatprep.subr.mxu0 0.0
  %246 = vmatpush1.xpose.msra.mxu0 0.0
  %247 = vmatprep.subr.mxu0 0.0
  %248 = vmatpush1.xpose.msra.mxu0 0.0
  %249 = vmatprep.subr.mxu0 0.0
  %250 = vmatpush1.xpose.msra.mxu0 0.0
  %251 = vmatprep.subr.mxu0 0.0
  %252 = vmatpush1.xpose.msra.mxu0 0.0
  %253 = vmatprep.subr.mxu0 0.0
  %254 = vmatpush1.xpose.msra.mxu0 0.0
  %255 = vmatprep.subr.mxu0 0.0
  %256 = vmatpush1.xpose.msra.mxu0 0.0
  %257 = vmatprep.subr.mxu0 0.0
  %258 = vmatpush1.xpose.msra.mxu0 0.0
  %259 = vmatprep.subr.mxu0 0.0
  %260 = vmatpush1.xpose.msra.mxu0 0.0
  %261 = vmatprep.subr.mxu0 0.0
  %262 = vmatpush1.xpose.msra.mxu0 0.0
  %263 = vmatprep.subr.mxu0 0.0
  %264 = vmatpush1.xpose.msra.mxu0 0.0
  %265 = vmatprep.subr.mxu0 0.0
  %266 = vmatpush1.xpose.msra.mxu0 0.0
  %267 = vmatprep.subr.mxu0 0.0
  %268 = vmatpush1.xpose.msra.mxu0 %v235
  %269 = vmatprep.subr.mxu0 0.0
  %270 = vmatpush2.xpose.msra.mxu0 0.0
  %271 = vmatprep.subr.mxu0 0.0
  %272 = vmatpush2.xpose.msra.mxu0 0.0
  %273 = vmatprep.subr.mxu0 0.0
  %274 = vmatpush2.xpose.msra.mxu0 0.0
  %275 = vmatprep.subr.mxu0 0.0
  %276 = vmatpush2.xpose.msra.mxu0 0.0
  %277 = vmatprep.subr.mxu0 0.0
  %278 = vmatpush2.xpose.msra.mxu0 0.0
  %279 = vmatprep.subr.mxu0 0.0
  %280 = vmatpush2.xpose.msra.mxu0 0.0
  %281 = vmatprep.subr.mxu0 0.0
  %282 = vmatpush2.xpose.msra.mxu0 0.0
  %283 = vmatprep.subr.mxu0 0.0
  %284 = vmatpush2.xpose.msra.mxu0 0.0
  %285 = vmatprep.subr.mxu0 0.0
  %286 = vmatpush2.xpose.msra.mxu0 0.0
  %287 = vmatprep.subr.mxu0 0.0
  %288 = vmatpush2.xpose.msra.mxu0 0.0
  %289 = vmatprep.subr.mxu0 0.0
  %290 = vmatpush2.xpose.msra.mxu0 0.0
  %291 = vmatprep.subr.mxu0 0.0
  %292 = vmatpush2.xpose.msra.mxu0 0.0
  %293 = vmatprep.subr.mxu0 0.0
  %294 = vmatpush2.xpose.msra.mxu0 0.0
  %295 = vmatprep.subr.mxu0 0.0
  %296 = vmatpush2.xpose.msra.mxu0 0.0
  %297 = vmatprep.subr.mxu0 0.0
  %298 = vmatpush2.xpose.msra.mxu0 0.0
  %299 = vmatprep.subr.mxu0 0.0
  %300 = vmatpush2.xpose.msra.mxu0 0.0
  %301 = vmatprep.mubr.f32.mxu0 0.0
  %302 = vmatmul.mubr.f32.gmra.mxu0 %v233
  %v303 = vpop.f32.mrf.mxu0
  %v304 = vadd.f32 %v149, %v303
  %v305 = vpop.f32.mrf.mxu0
  %306 = vdwg.mxu0
  %vm307 = vcmask 64512
  %v308 = vsel %vm307, %v227, -inf
  %309 = vmax.xlane.f32.xlu0 %v308
  %v310 = vpop.xlane.xlu0 %309
  %v311 = vsel %vm307, %v304, -inf
  %312 = vmax.xlane.f32.xlu0 %v311
  %v313 = vpop.xlane.xlu0 %312
  %v314 = vsub.f32 %v227, %v310
  %v315 = vsub.f32 %v304, %v313
  %v316 = vmul.f32 %v314, 1.442695
  %v317 = vpow.pop %v316
  %v318 = vmul.f32 %v315, 1.442695
  %v319 = vpow.pop %v318
  %v320 = vsel %vm307, %v317, 0.0
  %321 = vadd.xlane.f32.xlu0 %v320
  %v322 = vpop.xlane.xlu0 %321
  %v323 = vsel %vm307, %v319, 0.0
  %324 = vadd.xlane.f32.xlu0 %v323
  %v325 = vpop.xlane.xlu0 %324
  %v326 = vrcp.pop %v322
  %v327 = vrcp.pop %v325
  %v328 = vmul.f32 %v317, %v326
  %v329 = vmul.f32 %v319, %v327
  %330 = vrot.lane.b32.xlu0 %v130, 48
  %v331 = vpop.permute.xlu0 %330
  %v334 = vsel %vm307, %v328, 0
  %336 = vmatprep.subr.mxu0 0.0
  %337 = vmatpush1.msra.mxu0 0.0
  %338 = vmatprep.subr.mxu0 0.0
  %339 = vmatpush1.msra.mxu0 0.0
  %340 = vmatprep.subr.mxu0 0.0
  %341 = vmatpush1.msra.mxu0 0.0
  %342 = vmatprep.subr.mxu0 0.0
  %343 = vmatpush1.msra.mxu0 0.0
  %344 = vmatprep.subr.mxu0 0.0
  %345 = vmatpush1.msra.mxu0 0.0
  %346 = vmatprep.subr.mxu0 0.0
  %347 = vmatpush1.msra.mxu0 0.0
  %348 = vmatprep.subr.mxu0 0.0
  %349 = vmatpush1.msra.mxu0 0.0
  %350 = vmatprep.subr.mxu0 0.0
  %351 = vmatpush1.msra.mxu0 0.0
  %352 = vmatprep.subr.mxu0 0.0
  %353 = vmatpush1.msra.mxu0 0.0
  %354 = vmatprep.subr.mxu0 0.0
  %355 = vmatpush1.msra.mxu0 0.0
  %356 = vmatprep.subr.mxu0 0.0
  %357 = vmatpush1.msra.mxu0 0.0
  %358 = vmatprep.subr.mxu0 0.0
  %359 = vmatpush1.msra.mxu0 0.0
  %360 = vmatprep.subr.mxu0 0.0
  %361 = vmatpush1.msra.mxu0 0.0
  %362 = vmatprep.subr.mxu0 0.0
  %363 = vmatpush1.msra.mxu0 0.0
  %364 = vmatprep.subr.mxu0 0.0
  %365 = vmatpush1.msra.mxu0 0.0
  %366 = vmatprep.subr.mxu0 0.0
  %367 = vmatpush1.msra.mxu0 %v331
  %368 = vmatprep.subr.mxu0 0.0
  %369 = vmatpush2.msra.mxu0 0.0
  %370 = vmatprep.subr.mxu0 0.0
  %371 = vmatpush2.msra.mxu0 0.0
  %372 = vmatprep.subr.mxu0 0.0
  %373 = vmatpush2.msra.mxu0 0.0
  %374 = vmatprep.subr.mxu0 0.0
  %375 = vmatpush2.msra.mxu0 0.0
  %376 = vmatprep.subr.mxu0 0.0
  %377 = vmatpush2.msra.mxu0 0.0
  %378 = vmatprep.subr.mxu0 0.0
  %379 = vmatpush2.msra.mxu0 0.0
  %380 = vmatprep.subr.mxu0 0.0
  %381 = vmatpush2.msra.mxu0 0.0
  %382 = vmatprep.subr.mxu0 0.0
  %383 = vmatpush2.msra.mxu0 0.0
  %384 = vmatprep.subr.mxu0 0.0
  %385 = vmatpush2.msra.mxu0 0.0
  %386 = vmatprep.subr.mxu0 0.0
  %387 = vmatpush2.msra.mxu0 0.0
  %388 = vmatprep.subr.mxu0 0.0
  %389 = vmatpush2.msra.mxu0 0.0
  %390 = vmatprep.subr.mxu0 0.0
  %391 = vmatpush2.msra.mxu0 0.0
  %392 = vmatprep.subr.mxu0 0.0
  %393 = vmatpush2.msra.mxu0 0.0
  %394 = vmatprep.subr.mxu0 0.0
  %395 = vmatpush2.msra.mxu0 0.0
  %396 = vmatprep.subr.mxu0 0.0
  %397 = vmatpush2.msra.mxu0 0.0
  %398 = vmatprep.subr.mxu0 0.0
  %399 = vmatpush2.msra.mxu0 0.0
  %400 = vmatprep.mubr.f32.mxu0 0.0
  %401 = vmatmul.mubr.f32.gmra.mxu0 %v334
  %v402 = vpop.f32.mrf.mxu0
  %v403 = vadd.f32 0.0, %v402
  %v404 = vpop.f32.mrf.mxu0
  %405 = vdwg.mxu0
  %406 = vrot.lane.b32.xlu0 %v135, 48
  %v407 = vpop.permute.xlu0 %406
  %v410 = vsel %vm307, %v329, 0
  %412 = vmatprep.subr.mxu0 0.0
  %413 = vmatpush1.msra.mxu0 0.0
  %414 = vmatprep.subr.mxu0 0.0
  %415 = vmatpush1.msra.mxu0 0.0
  %416 = vmatprep.subr.mxu0 0.0
  %417 = vmatpush1.msra.mxu0 0.0
  %418 = vmatprep.subr.mxu0 0.0
  %419 = vmatpush1.msra.mxu0 0.0
  %420 = vmatprep.subr.mxu0 0.0
  %421 = vmatpush1.msra.mxu0 0.0
  %422 = vmatprep.subr.mxu0 0.0
  %423 = vmatpush1.msra.mxu0 0.0
  %424 = vmatprep.subr.mxu0 0.0
  %425 = vmatpush1.msra.mxu0 0.0
  %426 = vmatprep.subr.mxu0 0.0
  %427 = vmatpush1.msra.mxu0 0.0
  %428 = vmatprep.subr.mxu0 0.0
  %429 = vmatpush1.msra.mxu0 0.0
  %430 = vmatprep.subr.mxu0 0.0
  %431 = vmatpush1.msra.mxu0 0.0
  %432 = vmatprep.subr.mxu0 0.0
  %433 = vmatpush1.msra.mxu0 0.0
  %434 = vmatprep.subr.mxu0 0.0
  %435 = vmatpush1.msra.mxu0 0.0
  %436 = vmatprep.subr.mxu0 0.0
  %437 = vmatpush1.msra.mxu0 0.0
  %438 = vmatprep.subr.mxu0 0.0
  %439 = vmatpush1.msra.mxu0 0.0
  %440 = vmatprep.subr.mxu0 0.0
  %441 = vmatpush1.msra.mxu0 0.0
  %442 = vmatprep.subr.mxu0 0.0
  %443 = vmatpush1.msra.mxu0 %v407
  %444 = vmatprep.subr.mxu0 0.0
  %445 = vmatpush2.msra.mxu0 0.0
  %446 = vmatprep.subr.mxu0 0.0
  %447 = vmatpush2.msra.mxu0 0.0
  %448 = vmatprep.subr.mxu0 0.0
  %449 = vmatpush2.msra.mxu0 0.0
  %450 = vmatprep.subr.mxu0 0.0
  %451 = vmatpush2.msra.mxu0 0.0
  %452 = vmatprep.subr.mxu0 0.0
  %453 = vmatpush2.msra.mxu0 0.0
  %454 = vmatprep.subr.mxu0 0.0
  %455 = vmatpush2.msra.mxu0 0.0
  %456 = vmatprep.subr.mxu0 0.0
  %457 = vmatpush2.msra.mxu0 0.0
  %458 = vmatprep.subr.mxu0 0.0
  %459 = vmatpush2.msra.mxu0 0.0
  %460 = vmatprep.subr.mxu0 0.0
  %461 = vmatpush2.msra.mxu0 0.0
  %462 = vmatprep.subr.mxu0 0.0
  %463 = vmatpush2.msra.mxu0 0.0
  %464 = vmatprep.subr.mxu0 0.0
  %465 = vmatpush2.msra.mxu0 0.0
  %466 = vmatprep.subr.mxu0 0.0
  %467 = vmatpush2.msra.mxu0 0.0
  %468 = vmatprep.subr.mxu0 0.0
  %469 = vmatpush2.msra.mxu0 0.0
  %470 = vmatprep.subr.mxu0 0.0
  %471 = vmatpush2.msra.mxu0 0.0
  %472 = vmatprep.subr.mxu0 0.0
  %473 = vmatpush2.msra.mxu0 0.0
  %474 = vmatprep.subr.mxu0 0.0
  %475 = vmatpush2.msra.mxu0 0.0
  %476 = vmatprep.mubr.f32.mxu0 0.0
  %477 = vmatmul.mubr.f32.gmra.mxu0 %v410
  %v478 = vpop.f32.mrf.mxu0
  %v479 = vadd.f32 0.0, %v478
  %v480 = vpop.f32.mrf.mxu0
  %481 = vdwg.mxu0
  %482 = vrot.lane.b32.xlu0 %v130, 118
  %v483 = vpop.permute.xlu0 %482
  %484 = vrot.lane.b32.xlu0 %v130, 78
  %v485 = vpop.permute.xlu0 %484
  %v486 = vsel %vm155, %v483, 0
  %v488 = vsel %vm155, %v485, 0
  %490 = vmatprep.subr.mxu0 0.0
  %491 = vmatpush1.xpose.msra.mxu0 0.0
  %492 = vmatprep.subr.mxu0 0.0
  %493 = vmatpush1.xpose.msra.mxu0 0.0
  %494 = vmatprep.subr.mxu0 0.0
  %495 = vmatpush1.xpose.msra.mxu0 0.0
  %496 = vmatprep.subr.mxu0 0.0
  %497 = vmatpush1.xpose.msra.mxu0 0.0
  %498 = vmatprep.subr.mxu0 0.0
  %499 = vmatpush1.xpose.msra.mxu0 0.0
  %500 = vmatprep.subr.mxu0 0.0
  %501 = vmatpush1.xpose.msra.mxu0 0.0
  %502 = vmatprep.subr.mxu0 0.0
  %503 = vmatpush1.xpose.msra.mxu0 0.0
  %504 = vmatprep.subr.mxu0 0.0
  %505 = vmatpush1.xpose.msra.mxu0 0.0
  %506 = vmatprep.subr.mxu0 0.0
  %507 = vmatpush1.xpose.msra.mxu0 0.0
  %508 = vmatprep.subr.mxu0 0.0
  %509 = vmatpush1.xpose.msra.mxu0 0.0
  %510 = vmatprep.subr.mxu0 0.0
  %511 = vmatpush1.xpose.msra.mxu0 0.0
  %512 = vmatprep.subr.mxu0 0.0
  %513 = vmatpush1.xpose.msra.mxu0 0.0
  %514 = vmatprep.subr.mxu0 0.0
  %515 = vmatpush1.xpose.msra.mxu0 0.0
  %516 = vmatprep.subr.mxu0 0.0
  %517 = vmatpush1.xpose.msra.mxu0 0.0
  %518 = vmatprep.subr.mxu0 0.0
  %519 = vmatpush1.xpose.msra.mxu0 0.0
  %520 = vmatprep.subr.mxu0 0.0
  %521 = vmatpush1.xpose.msra.mxu0 %v488
  %522 = vmatprep.subr.mxu0 0.0
  %523 = vmatpush2.xpose.msra.mxu0 0.0
  %524 = vmatprep.subr.mxu0 0.0
  %525 = vmatpush2.xpose.msra.mxu0 0.0
  %526 = vmatprep.subr.mxu0 0.0
  %527 = vmatpush2.xpose.msra.mxu0 0.0
  %528 = vmatprep.subr.mxu0 0.0
  %529 = vmatpush2.xpose.msra.mxu0 0.0
  %530 = vmatprep.subr.mxu0 0.0
  %531 = vmatpush2.xpose.msra.mxu0 0.0
  %532 = vmatprep.subr.mxu0 0.0
  %533 = vmatpush2.xpose.msra.mxu0 0.0
  %534 = vmatprep.subr.mxu0 0.0
  %535 = vmatpush2.xpose.msra.mxu0 0.0
  %536 = vmatprep.subr.mxu0 0.0
  %537 = vmatpush2.xpose.msra.mxu0 0.0
  %538 = vmatprep.subr.mxu0 0.0
  %539 = vmatpush2.xpose.msra.mxu0 0.0
  %540 = vmatprep.subr.mxu0 0.0
  %541 = vmatpush2.xpose.msra.mxu0 0.0
  %542 = vmatprep.subr.mxu0 0.0
  %543 = vmatpush2.xpose.msra.mxu0 0.0
  %544 = vmatprep.subr.mxu0 0.0
  %545 = vmatpush2.xpose.msra.mxu0 0.0
  %546 = vmatprep.subr.mxu0 0.0
  %547 = vmatpush2.xpose.msra.mxu0 0.0
  %548 = vmatprep.subr.mxu0 0.0
  %549 = vmatpush2.xpose.msra.mxu0 0.0
  %550 = vmatprep.subr.mxu0 0.0
  %551 = vmatpush2.xpose.msra.mxu0 0.0
  %552 = vmatprep.subr.mxu0 0.0
  %553 = vmatpush2.xpose.msra.mxu0 0.0
  %554 = vmatprep.mubr.f32.mxu0 0.0
  %555 = vmatmul.mubr.f32.gmra.mxu0 %v486
  %v556 = vpop.f32.mrf.mxu0
  %v557 = vadd.f32 %v145, %v556
  %v558 = vpop.f32.mrf.mxu0
  %559 = vdwg.mxu0
  %560 = vrot.lane.b32.xlu0 %v135, 118
  %v561 = vpop.permute.xlu0 %560
  %562 = vrot.lane.b32.xlu0 %v135, 78
  %v563 = vpop.permute.xlu0 %562
  %v564 = vsel %vm155, %v561, 0
  %v566 = vsel %vm155, %v563, 0
  %568 = vmatprep.subr.mxu0 0.0
  %569 = vmatpush1.xpose.msra.mxu0 0.0
  %570 = vmatprep.subr.mxu0 0.0
  %571 = vmatpush1.xpose.msra.mxu0 0.0
  %572 = vmatprep.subr.mxu0 0.0
  %573 = vmatpush1.xpose.msra.mxu0 0.0
  %574 = vmatprep.subr.mxu0 0.0
  %575 = vmatpush1.xpose.msra.mxu0 0.0
  %576 = vmatprep.subr.mxu0 0.0
  %577 = vmatpush1.xpose.msra.mxu0 0.0
  %578 = vmatprep.subr.mxu0 0.0
  %579 = vmatpush1.xpose.msra.mxu0 0.0
  %580 = vmatprep.subr.mxu0 0.0
  %581 = vmatpush1.xpose.msra.mxu0 0.0
  %582 = vmatprep.subr.mxu0 0.0
  %583 = vmatpush1.xpose.msra.mxu0 0.0
  %584 = vmatprep.subr.mxu0 0.0
  %585 = vmatpush1.xpose.msra.mxu0 0.0
  %586 = vmatprep.subr.mxu0 0.0
  %587 = vmatpush1.xpose.msra.mxu0 0.0
  %588 = vmatprep.subr.mxu0 0.0
  %589 = vmatpush1.xpose.msra.mxu0 0.0
  %590 = vmatprep.subr.mxu0 0.0
  %591 = vmatpush1.xpose.msra.mxu0 0.0
  %592 = vmatprep.subr.mxu0 0.0
  %593 = vmatpush1.xpose.msra.mxu0 0.0
  %594 = vmatprep.subr.mxu0 0.0
  %595 = vmatpush1.xpose.msra.mxu0 0.0
  %596 = vmatprep.subr.mxu0 0.0
  %597 = vmatpush1.xpose.msra.mxu0 0.0
  %598 = vmatprep.subr.mxu0 0.0
  %599 = vmatpush1.xpose.msra.mxu0 %v566
  %600 = vmatprep.subr.mxu0 0.0
  %601 = vmatpush2.xpose.msra.mxu0 0.0
  %602 = vmatprep.subr.mxu0 0.0
  %603 = vmatpush2.xpose.msra.mxu0 0.0
  %604 = vmatprep.subr.mxu0 0.0
  %605 = vmatpush2.xpose.msra.mxu0 0.0
  %606 = vmatprep.subr.mxu0 0.0
  %607 = vmatpush2.xpose.msra.mxu0 0.0
  %608 = vmatprep.subr.mxu0 0.0
  %609 = vmatpush2.xpose.msra.mxu0 0.0
  %610 = vmatprep.subr.mxu0 0.0
  %611 = vmatpush2.xpose.msra.mxu0 0.0
  %612 = vmatprep.subr.mxu0 0.0
  %613 = vmatpush2.xpose.msra.mxu0 0.0
  %614 = vmatprep.subr.mxu0 0.0
  %615 = vmatpush2.xpose.msra.mxu0 0.0
  %616 = vmatprep.subr.mxu0 0.0
  %617 = vmatpush2.xpose.msra.mxu0 0.0
  %618 = vmatprep.subr.mxu0 0.0
  %619 = vmatpush2.xpose.msra.mxu0 0.0
  %620 = vmatprep.subr.mxu0 0.0
  %621 = vmatpush2.xpose.msra.mxu0 0.0
  %622 = vmatprep.subr.mxu0 0.0
  %623 = vmatpush2.xpose.msra.mxu0 0.0
  %624 = vmatprep.subr.mxu0 0.0
  %625 = vmatpush2.xpose.msra.mxu0 0.0
  %626 = vmatprep.subr.mxu0 0.0
  %627 = vmatpush2.xpose.msra.mxu0 0.0
  %628 = vmatprep.subr.mxu0 0.0
  %629 = vmatpush2.xpose.msra.mxu0 0.0
  %630 = vmatprep.subr.mxu0 0.0
  %631 = vmatpush2.xpose.msra.mxu0 0.0
  %632 = vmatprep.mubr.f32.mxu0 0.0
  %633 = vmatmul.mubr.f32.gmra.mxu0 %v564
  %v634 = vpop.f32.mrf.mxu0
  %v635 = vadd.f32 %v149, %v634
  %v636 = vpop.f32.mrf.mxu0
  %637 = vdwg.mxu0
  %v638 = vsel %vm307, %v557, -inf
  %639 = vmax.xlane.f32.xlu0 %v638
  %v640 = vpop.xlane.xlu0 %639
  %v641 = vsel %vm307, %v635, -inf
  %642 = vmax.xlane.f32.xlu0 %v641
  %v643 = vpop.xlane.xlu0 %642
  %v644 = vsub.f32 %v557, %v640
  %v645 = vsub.f32 %v635, %v643
  %v646 = vmul.f32 %v644, 1.442695
  %v647 = vpow.pop %v646
  %v648 = vmul.f32 %v645, 1.442695
  %v649 = vpow.pop %v648
  %v650 = vsel %vm307, %v647, 0.0
  %651 = vadd.xlane.f32.xlu0 %v650
  %v652 = vpop.xlane.xlu0 %651
  %v653 = vsel %vm307, %v649, 0.0
  %654 = vadd.xlane.f32.xlu0 %v653
  %v655 = vpop.xlane.xlu0 %654
  %v656 = vrcp.pop %v652
  %v657 = vrcp.pop %v655
  %v658 = vmul.f32 %v647, %v656
  %v659 = vmul.f32 %v649, %v657
  %660 = vrot.lane.b32.xlu0 %v130, 38
  %v661 = vpop.permute.xlu0 %660
  %v664 = vsel %vm307, %v658, 0
  %666 = vmatprep.subr.mxu0 0.0
  %667 = vmatpush1.msra.mxu0 0.0
  %668 = vmatprep.subr.mxu0 0.0
  %669 = vmatpush1.msra.mxu0 0.0
  %670 = vmatprep.subr.mxu0 0.0
  %671 = vmatpush1.msra.mxu0 0.0
  %672 = vmatprep.subr.mxu0 0.0
  %673 = vmatpush1.msra.mxu0 0.0
  %674 = vmatprep.subr.mxu0 0.0
  %675 = vmatpush1.msra.mxu0 0.0
  %676 = vmatprep.subr.mxu0 0.0
  %677 = vmatpush1.msra.mxu0 0.0
  %678 = vmatprep.subr.mxu0 0.0
  %679 = vmatpush1.msra.mxu0 0.0
  %680 = vmatprep.subr.mxu0 0.0
  %681 = vmatpush1.msra.mxu0 0.0
  %682 = vmatprep.subr.mxu0 0.0
  %683 = vmatpush1.msra.mxu0 0.0
  %684 = vmatprep.subr.mxu0 0.0
  %685 = vmatpush1.msra.mxu0 0.0
  %686 = vmatprep.subr.mxu0 0.0
  %687 = vmatpush1.msra.mxu0 0.0
  %688 = vmatprep.subr.mxu0 0.0
  %689 = vmatpush1.msra.mxu0 0.0
  %690 = vmatprep.subr.mxu0 0.0
  %691 = vmatpush1.msra.mxu0 0.0
  %692 = vmatprep.subr.mxu0 0.0
  %693 = vmatpush1.msra.mxu0 0.0
  %694 = vmatprep.subr.mxu0 0.0
  %695 = vmatpush1.msra.mxu0 0.0
  %696 = vmatprep.subr.mxu0 0.0
  %697 = vmatpush1.msra.mxu0 %v661
  %698 = vmatprep.subr.mxu0 0.0
  %699 = vmatpush2.msra.mxu0 0.0
  %700 = vmatprep.subr.mxu0 0.0
  %701 = vmatpush2.msra.mxu0 0.0
  %702 = vmatprep.subr.mxu0 0.0
  %703 = vmatpush2.msra.mxu0 0.0
  %704 = vmatprep.subr.mxu0 0.0
  %705 = vmatpush2.msra.mxu0 0.0
  %706 = vmatprep.subr.mxu0 0.0
  %707 = vmatpush2.msra.mxu0 0.0
  %708 = vmatprep.subr.mxu0 0.0
  %709 = vmatpush2.msra.mxu0 0.0
  %710 = vmatprep.subr.mxu0 0.0
  %711 = vmatpush2.msra.mxu0 0.0
  %712 = vmatprep.subr.mxu0 0.0
  %713 = vmatpush2.msra.mxu0 0.0
  %714 = vmatprep.subr.mxu0 0.0
  %715 = vmatpush2.msra.mxu0 0.0
  %716 = vmatprep.subr.mxu0 0.0
  %717 = vmatpush2.msra.mxu0 0.0
  %718 = vmatprep.subr.mxu0 0.0
  %719 = vmatpush2.msra.mxu0 0.0
  %720 = vmatprep.subr.mxu0 0.0
  %721 = vmatpush2.msra.mxu0 0.0
  %722 = vmatprep.subr.mxu0 0.0
  %723 = vmatpush2.msra.mxu0 0.0
  %724 = vmatprep.subr.mxu0 0.0
  %725 = vmatpush2.msra.mxu0 0.0
  %726 = vmatprep.subr.mxu0 0.0
  %727 = vmatpush2.msra.mxu0 0.0
  %728 = vmatprep.subr.mxu0 0.0
  %729 = vmatpush2.msra.mxu0 0.0
  %730 = vmatprep.mubr.f32.mxu0 0.0
  %731 = vmatmul.mubr.f32.gmra.mxu0 %v664
  %v732 = vpop.f32.mrf.mxu0
  %v733 = vadd.f32 0.0, %v732
  %v734 = vpop.f32.mrf.mxu0
  %735 = vdwg.mxu0
  %736 = vrot.lane.b32.xlu0 %v135, 38
  %v737 = vpop.permute.xlu0 %736
  %v740 = vsel %vm307, %v659, 0
  %742 = vmatprep.subr.mxu0 0.0
  %743 = vmatpush1.msra.mxu0 0.0
  %744 = vmatprep.subr.mxu0 0.0
  %745 = vmatpush1.msra.mxu0 0.0
  %746 = vmatprep.subr.mxu0 0.0
  %747 = vmatpush1.msra.mxu0 0.0
  %748 = vmatprep.subr.mxu0 0.0
  %749 = vmatpush1.msra.mxu0 0.0
  %750 = vmatprep.subr.mxu0 0.0
  %751 = vmatpush1.msra.mxu0 0.0
  %752 = vmatprep.subr.mxu0 0.0
  %753 = vmatpush1.msra.mxu0 0.0
  %754 = vmatprep.subr.mxu0 0.0
  %755 = vmatpush1.msra.mxu0 0.0
  %756 = vmatprep.subr.mxu0 0.0
  %757 = vmatpush1.msra.mxu0 0.0
  %758 = vmatprep.subr.mxu0 0.0
  %759 = vmatpush1.msra.mxu0 0.0
  %760 = vmatprep.subr.mxu0 0.0
  %761 = vmatpush1.msra.mxu0 0.0
  %762 = vmatprep.subr.mxu0 0.0
  %763 = vmatpush1.msra.mxu0 0.0
  %764 = vmatprep.subr.mxu0 0.0
  %765 = vmatpush1.msra.mxu0 0.0
  %766 = vmatprep.subr.mxu0 0.0
  %767 = vmatpush1.msra.mxu0 0.0
  %768 = vmatprep.subr.mxu0 0.0
  %769 = vmatpush1.msra.mxu0 0.0
  %770 = vmatprep.subr.mxu0 0.0
  %771 = vmatpush1.msra.mxu0 0.0
  %772 = vmatprep.subr.mxu0 0.0
  %773 = vmatpush1.msra.mxu0 %v737
  %774 = vmatprep.subr.mxu0 0.0
  %775 = vmatpush2.msra.mxu0 0.0
  %776 = vmatprep.subr.mxu0 0.0
  %777 = vmatpush2.msra.mxu0 0.0
  %778 = vmatprep.subr.mxu0 0.0
  %779 = vmatpush2.msra.mxu0 0.0
  %780 = vmatprep.subr.mxu0 0.0
  %781 = vmatpush2.msra.mxu0 0.0
  %782 = vmatprep.subr.mxu0 0.0
  %783 = vmatpush2.msra.mxu0 0.0
  %784 = vmatprep.subr.mxu0 0.0
  %785 = vmatpush2.msra.mxu0 0.0
  %786 = vmatprep.subr.mxu0 0.0
  %787 = vmatpush2.msra.mxu0 0.0
  %788 = vmatprep.subr.mxu0 0.0
  %789 = vmatpush2.msra.mxu0 0.0
  %790 = vmatprep.subr.mxu0 0.0
  %791 = vmatpush2.msra.mxu0 0.0
  %792 = vmatprep.subr.mxu0 0.0
  %793 = vmatpush2.msra.mxu0 0.0
  %794 = vmatprep.subr.mxu0 0.0
  %795 = vmatpush2.msra.mxu0 0.0
  %796 = vmatprep.subr.mxu0 0.0
  %797 = vmatpush2.msra.mxu0 0.0
  %798 = vmatprep.subr.mxu0 0.0
  %799 = vmatpush2.msra.mxu0 0.0
  %800 = vmatprep.subr.mxu0 0.0
  %801 = vmatpush2.msra.mxu0 0.0
  %802 = vmatprep.subr.mxu0 0.0
  %803 = vmatpush2.msra.mxu0 0.0
  %804 = vmatprep.subr.mxu0 0.0
  %805 = vmatpush2.msra.mxu0 0.0
  %806 = vmatprep.mubr.f32.mxu0 0.0
  %807 = vmatmul.mubr.f32.gmra.mxu0 %v740
  %v808 = vpop.f32.mrf.mxu0
  %v809 = vadd.f32 0.0, %v808
  %v810 = vpop.f32.mrf.mxu0
  %811 = vdwg.mxu0
  %812 = vrot.lane.b32.xlu0 %v130, 108
  %v813 = vpop.permute.xlu0 %812
  %814 = vrot.lane.b32.xlu0 %v130, 68
  %v815 = vpop.permute.xlu0 %814
  %v816 = vsel %vm155, %v813, 0
  %v818 = vsel %vm155, %v815, 0
  %820 = vmatprep.subr.mxu0 0.0
  %821 = vmatpush1.xpose.msra.mxu0 0.0
  %822 = vmatprep.subr.mxu0 0.0
  %823 = vmatpush1.xpose.msra.mxu0 0.0
  %824 = vmatprep.subr.mxu0 0.0
  %825 = vmatpush1.xpose.msra.mxu0 0.0
  %826 = vmatprep.subr.mxu0 0.0
  %827 = vmatpush1.xpose.msra.mxu0 0.0
  %828 = vmatprep.subr.mxu0 0.0
  %829 = vmatpush1.xpose.msra.mxu0 0.0
  %830 = vmatprep.subr.mxu0 0.0
  %831 = vmatpush1.xpose.msra.mxu0 0.0
  %832 = vmatprep.subr.mxu0 0.0
  %833 = vmatpush1.xpose.msra.mxu0 0.0
  %834 = vmatprep.subr.mxu0 0.0
  %835 = vmatpush1.xpose.msra.mxu0 0.0
  %836 = vmatprep.subr.mxu0 0.0
  %837 = vmatpush1.xpose.msra.mxu0 0.0
  %838 = vmatprep.subr.mxu0 0.0
  %839 = vmatpush1.xpose.msra.mxu0 0.0
  %840 = vmatprep.subr.mxu0 0.0
  %841 = vmatpush1.xpose.msra.mxu0 0.0
  %842 = vmatprep.subr.mxu0 0.0
  %843 = vmatpush1.xpose.msra.mxu0 0.0
  %844 = vmatprep.subr.mxu0 0.0
  %845 = vmatpush1.xpose.msra.mxu0 0.0
  %846 = vmatprep.subr.mxu0 0.0
  %847 = vmatpush1.xpose.msra.mxu0 0.0
  %848 = vmatprep.subr.mxu0 0.0
  %849 = vmatpush1.xpose.msra.mxu0 0.0
  %850 = vmatprep.subr.mxu0 0.0
  %851 = vmatpush1.xpose.msra.mxu0 %v818
  %852 = vmatprep.subr.mxu0 0.0
  %853 = vmatpush2.xpose.msra.mxu0 0.0
  %854 = vmatprep.subr.mxu0 0.0
  %855 = vmatpush2.xpose.msra.mxu0 0.0
  %856 = vmatprep.subr.mxu0 0.0
  %857 = vmatpush2.xpose.msra.mxu0 0.0
  %858 = vmatprep.subr.mxu0 0.0
  %859 = vmatpush2.xpose.msra.mxu0 0.0
  %860 = vmatprep.subr.mxu0 0.0
  %861 = vmatpush2.xpose.msra.mxu0 0.0
  %862 = vmatprep.subr.mxu0 0.0
  %863 = vmatpush2.xpose.msra.mxu0 0.0
  %864 = vmatprep.subr.mxu0 0.0
  %865 = vmatpush2.xpose.msra.mxu0 0.0
  %866 = vmatprep.subr.mxu0 0.0
  %867 = vmatpush2.xpose.msra.mxu0 0.0
  %868 = vmatprep.subr.mxu0 0.0
  %869 = vmatpush2.xpose.msra.mxu0 0.0
  %870 = vmatprep.subr.mxu0 0.0
  %871 = vmatpush2.xpose.msra.mxu0 0.0
  %872 = vmatprep.subr.mxu0 0.0
  %873 = vmatpush2.xpose.msra.mxu0 0.0
  %874 = vmatprep.subr.mxu0 0.0
  %875 = vmatpush2.xpose.msra.mxu0 0.0
  %876 = vmatprep.subr.mxu0 0.0
  %877 = vmatpush2.xpose.msra.mxu0 0.0
  %878 = vmatprep.subr.mxu0 0.0
  %879 = vmatpush2.xpose.msra.mxu0 0.0
  %880 = vmatprep.subr.mxu0 0.0
  %881 = vmatpush2.xpose.msra.mxu0 0.0
  %882 = vmatprep.subr.mxu0 0.0
  %883 = vmatpush2.xpose.msra.mxu0 0.0
  %884 = vmatprep.mubr.f32.mxu0 0.0
  %885 = vmatmul.mubr.f32.gmra.mxu0 %v816
  %v886 = vpop.f32.mrf.mxu0
  %v887 = vadd.f32 %v145, %v886
  %v888 = vpop.f32.mrf.mxu0
  %889 = vdwg.mxu0
  %890 = vrot.lane.b32.xlu0 %v135, 108
  %v891 = vpop.permute.xlu0 %890
  %892 = vrot.lane.b32.xlu0 %v135, 68
  %v893 = vpop.permute.xlu0 %892
  %v894 = vsel %vm155, %v891, 0
  %v896 = vsel %vm155, %v893, 0
  %898 = vmatprep.subr.mxu0 0.0
  %899 = vmatpush1.xpose.msra.mxu0 0.0
  %900 = vmatprep.subr.mxu0 0.0
  %901 = vmatpush1.xpose.msra.mxu0 0.0
  %902 = vmatprep.subr.mxu0 0.0
  %903 = vmatpush1.xpose.msra.mxu0 0.0
  %904 = vmatprep.subr.mxu0 0.0
  %905 = vmatpush1.xpose.msra.mxu0 0.0
  %906 = vmatprep.subr.mxu0 0.0
  %907 = vmatpush1.xpose.msra.mxu0 0.0
  %908 = vmatprep.subr.mxu0 0.0
  %909 = vmatpush1.xpose.msra.mxu0 0.0
  %910 = vmatprep.subr.mxu0 0.0
  %911 = vmatpush1.xpose.msra.mxu0 0.0
  %912 = vmatprep.subr.mxu0 0.0
  %913 = vmatpush1.xpose.msra.mxu0 0.0
  %914 = vmatprep.subr.mxu0 0.0
  %915 = vmatpush1.xpose.msra.mxu0 0.0
  %916 = vmatprep.subr.mxu0 0.0
  %917 = vmatpush1.xpose.msra.mxu0 0.0
  %918 = vmatprep.subr.mxu0 0.0
  %919 = vmatpush1.xpose.msra.mxu0 0.0
  %920 = vmatprep.subr.mxu0 0.0
  %921 = vmatpush1.xpose.msra.mxu0 0.0
  %922 = vmatprep.subr.mxu0 0.0
  %923 = vmatpush1.xpose.msra.mxu0 0.0
  %924 = vmatprep.subr.mxu0 0.0
  %925 = vmatpush1.xpose.msra.mxu0 0.0
  %926 = vmatprep.subr.mxu0 0.0
  %927 = vmatpush1.xpose.msra.mxu0 0.0
  %928 = vmatprep.subr.mxu0 0.0
  %929 = vmatpush1.xpose.msra.mxu0 %v896
  %930 = vmatprep.subr.mxu0 0.0
  %931 = vmatpush2.xpose.msra.mxu0 0.0
  %932 = vmatprep.subr.mxu0 0.0
  %933 = vmatpush2.xpose.msra.mxu0 0.0
  %934 = vmatprep.subr.mxu0 0.0
  %935 = vmatpush2.xpose.msra.mxu0 0.0
  %936 = vmatprep.subr.mxu0 0.0
  %937 = vmatpush2.xpose.msra.mxu0 0.0
  %938 = vmatprep.subr.mxu0 0.0
  %939 = vmatpush2.xpose.msra.mxu0 0.0
  %940 = vmatprep.subr.mxu0 0.0
  %941 = vmatpush2.xpose.msra.mxu0 0.0
  %942 = vmatprep.subr.mxu0 0.0
  %943 = vmatpush2.xpose.msra.mxu0 0.0
  %944 = vmatprep.subr.mxu0 0.0
  %945 = vmatpush2.xpose.msra.mxu0 0.0
  %946 = vmatprep.subr.mxu0 0.0
  %947 = vmatpush2.xpose.msra.mxu0 0.0
  %948 = vmatprep.subr.mxu0 0.0
  %949 = vmatpush2.xpose.msra.mxu0 0.0
  %950 = vmatprep.subr.mxu0 0.0
  %951 = vmatpush2.xpose.msra.mxu0 0.0
  %952 = vmatprep.subr.mxu0 0.0
  %953 = vmatpush2.xpose.msra.mxu0 0.0
  %954 = vmatprep.subr.mxu0 0.0
  %955 = vmatpush2.xpose.msra.mxu0 0.0
  %956 = vmatprep.subr.mxu0 0.0
  %957 = vmatpush2.xpose.msra.mxu0 0.0
  %958 = vmatprep.subr.mxu0 0.0
  %959 = vmatpush2.xpose.msra.mxu0 0.0
  %960 = vmatprep.subr.mxu0 0.0
  %961 = vmatpush2.xpose.msra.mxu0 0.0
  %962 = vmatprep.mubr.f32.mxu0 0.0
  %963 = vmatmul.mubr.f32.gmra.mxu0 %v894
  %v964 = vpop.f32.mrf.mxu0
  %v965 = vadd.f32 %v149, %v964
  %v966 = vpop.f32.mrf.mxu0
  %967 = vdwg.mxu0
  %v968 = vsel %vm307, %v887, -inf
  %969 = vmax.xlane.f32.xlu0 %v968
  %v970 = vpop.xlane.xlu0 %969
  %v971 = vsel %vm307, %v965, -inf
  %972 = vmax.xlane.f32.xlu0 %v971
  %v973 = vpop.xlane.xlu0 %972
  %v974 = vsub.f32 %v887, %v970
  %v975 = vsub.f32 %v965, %v973
  %v976 = vmul.f32 %v974, 1.442695
  %v977 = vpow.pop %v976
  %v978 = vmul.f32 %v975, 1.442695
  %v979 = vpow.pop %v978
  %v980 = vsel %vm307, %v977, 0.0
  %981 = vadd.xlane.f32.xlu0 %v980
  %v982 = vpop.xlane.xlu0 %981
  %v983 = vsel %vm307, %v979, 0.0
  %984 = vadd.xlane.f32.xlu0 %v983
  %v985 = vpop.xlane.xlu0 %984
  %v986 = vrcp.pop %v982
  %v987 = vrcp.pop %v985
  %v988 = vmul.f32 %v977, %v986
  %v989 = vmul.f32 %v979, %v987
  %990 = vrot.lane.b32.xlu0 %v130, 28
  %v991 = vpop.permute.xlu0 %990
  %v994 = vsel %vm307, %v988, 0
  %996 = vmatprep.subr.mxu0 0.0
  %997 = vmatpush1.msra.mxu0 0.0
  %998 = vmatprep.subr.mxu0 0.0
  %999 = vmatpush1.msra.mxu0 0.0
  %1000 = vmatprep.subr.mxu0 0.0
  %1001 = vmatpush1.msra.mxu0 0.0
  %1002 = vmatprep.subr.mxu0 0.0
  %1003 = vmatpush1.msra.mxu0 0.0
  %1004 = vmatprep.subr.mxu0 0.0
  %1005 = vmatpush1.msra.mxu0 0.0
  %1006 = vmatprep.subr.mxu0 0.0
  %1007 = vmatpush1.msra.mxu0 0.0
  %1008 = vmatprep.subr.mxu0 0.0
  %1009 = vmatpush1.msra.mxu0 0.0
  %1010 = vmatprep.subr.mxu0 0.0
  %1011 = vmatpush1.msra.mxu0 0.0
  %1012 = vmatprep.subr.mxu0 0.0
  %1013 = vmatpush1.msra.mxu0 0.0
  %1014 = vmatprep.subr.mxu0 0.0
  %1015 = vmatpush1.msra.mxu0 0.0
  %1016 = vmatprep.subr.mxu0 0.0
  %1017 = vmatpush1.msra.mxu0 0.0
  %1018 = vmatprep.subr.mxu0 0.0
  %1019 = vmatpush1.msra.mxu0 0.0
  %1020 = vmatprep.subr.mxu0 0.0
  %1021 = vmatpush1.msra.mxu0 0.0
  %1022 = vmatprep.subr.mxu0 0.0
  %1023 = vmatpush1.msra.mxu0 0.0
  %1024 = vmatprep.subr.mxu0 0.0
  %1025 = vmatpush1.msra.mxu0 0.0
  %1026 = vmatprep.subr.mxu0 0.0
  %1027 = vmatpush1.msra.mxu0 %v991
  %1028 = vmatprep.subr.mxu0 0.0
  %1029 = vmatpush2.msra.mxu0 0.0
  %1030 = vmatprep.subr.mxu0 0.0
  %1031 = vmatpush2.msra.mxu0 0.0
  %1032 = vmatprep.subr.mxu0 0.0
  %1033 = vmatpush2.msra.mxu0 0.0
  %1034 = vmatprep.subr.mxu0 0.0
  %1035 = vmatpush2.msra.mxu0 0.0
  %1036 = vmatprep.subr.mxu0 0.0
  %1037 = vmatpush2.msra.mxu0 0.0
  %1038 = vmatprep.subr.mxu0 0.0
  %1039 = vmatpush2.msra.mxu0 0.0
  %1040 = vmatprep.subr.mxu0 0.0
  %1041 = vmatpush2.msra.mxu0 0.0
  %1042 = vmatprep.subr.mxu0 0.0
  %1043 = vmatpush2.msra.mxu0 0.0
  %1044 = vmatprep.subr.mxu0 0.0
  %1045 = vmatpush2.msra.mxu0 0.0
  %1046 = vmatprep.subr.mxu0 0.0
  %1047 = vmatpush2.msra.mxu0 0.0
  %1048 = vmatprep.subr.mxu0 0.0
  %1049 = vmatpush2.msra.mxu0 0.0
  %1050 = vmatprep.subr.mxu0 0.0
  %1051 = vmatpush2.msra.mxu0 0.0
  %1052 = vmatprep.subr.mxu0 0.0
  %1053 = vmatpush2.msra.mxu0 0.0
  %1054 = vmatprep.subr.mxu0 0.0
  %1055 = vmatpush2.msra.mxu0 0.0
  %1056 = vmatprep.subr.mxu0 0.0
  %1057 = vmatpush2.msra.mxu0 0.0
  %1058 = vmatprep.subr.mxu0 0.0
  %1059 = vmatpush2.msra.mxu0 0.0
  %1060 = vmatprep.mubr.f32.mxu0 0.0
  %1061 = vmatmul.mubr.f32.gmra.mxu0 %v994
  %v1062 = vpop.f32.mrf.mxu0
  %v1063 = vadd.f32 0.0, %v1062
  %v1064 = vpop.f32.mrf.mxu0
  %1065 = vdwg.mxu0
  %1066 = vrot.lane.b32.xlu0 %v135, 28
  %v1067 = vpop.permute.xlu0 %1066
  %v1070 = vsel %vm307, %v989, 0
  %1072 = vmatprep.subr.mxu0 0.0
  %1073 = vmatpush1.msra.mxu0 0.0
  %1074 = vmatprep.subr.mxu0 0.0
  %1075 = vmatpush1.msra.mxu0 0.0
  %1076 = vmatprep.subr.mxu0 0.0
  %1077 = vmatpush1.msra.mxu0 0.0
  %1078 = vmatprep.subr.mxu0 0.0
  %1079 = vmatpush1.msra.mxu0 0.0
  %1080 = vmatprep.subr.mxu0 0.0
  %1081 = vmatpush1.msra.mxu0 0.0
  %1082 = vmatprep.subr.mxu0 0.0
  %1083 = vmatpush1.msra.mxu0 0.0
  %1084 = vmatprep.subr.mxu0 0.0
  %1085 = vmatpush1.msra.mxu0 0.0
  %1086 = vmatprep.subr.mxu0 0.0
  %1087 = vmatpush1.msra.mxu0 0.0
  %1088 = vmatprep.subr.mxu0 0.0
  %1089 = vmatpush1.msra.mxu0 0.0
  %1090 = vmatprep.subr.mxu0 0.0
  %1091 = vmatpush1.msra.mxu0 0.0
  %1092 = vmatprep.subr.mxu0 0.0
  %1093 = vmatpush1.msra.mxu0 0.0
  %1094 = vmatprep.subr.mxu0 0.0
  %1095 = vmatpush1.msra.mxu0 0.0
  %1096 = vmatprep.subr.mxu0 0.0
  %1097 = vmatpush1.msra.mxu0 0.0
  %1098 = vmatprep.subr.mxu0 0.0
  %1099 = vmatpush1.msra.mxu0 0.0
  %1100 = vmatprep.subr.mxu0 0.0
  %1101 = vmatpush1.msra.mxu0 0.0
  %1102 = vmatprep.subr.mxu0 0.0
  %1103 = vmatpush1.msra.mxu0 %v1067
  %1104 = vmatprep.subr.mxu0 0.0
  %1105 = vmatpush2.msra.mxu0 0.0
  %1106 = vmatprep.subr.mxu0 0.0
  %1107 = vmatpush2.msra.mxu0 0.0
  %1108 = vmatprep.subr.mxu0 0.0
  %1109 = vmatpush2.msra.mxu0 0.0
  %1110 = vmatprep.subr.mxu0 0.0
  %1111 = vmatpush2.msra.mxu0 0.0
  %1112 = vmatprep.subr.mxu0 0.0
  %1113 = vmatpush2.msra.mxu0 0.0
  %1114 = vmatprep.subr.mxu0 0.0
  %1115 = vmatpush2.msra.mxu0 0.0
  %1116 = vmatprep.subr.mxu0 0.0
  %1117 = vmatpush2.msra.mxu0 0.0
  %1118 = vmatprep.subr.mxu0 0.0
  %1119 = vmatpush2.msra.mxu0 0.0
  %1120 = vmatprep.subr.mxu0 0.0
  %1121 = vmatpush2.msra.mxu0 0.0
  %1122 = vmatprep.subr.mxu0 0.0
  %1123 = vmatpush2.msra.mxu0 0.0
  %1124 = vmatprep.subr.mxu0 0.0
  %1125 = vmatpush2.msra.mxu0 0.0
  %1126 = vmatprep.subr.mxu0 0.0
  %1127 = vmatpush2.msra.mxu0 0.0
  %1128 = vmatprep.subr.mxu0 0.0
  %1129 = vmatpush2.msra.mxu0 0.0
  %1130 = vmatprep.subr.mxu0 0.0
  %1131 = vmatpush2.msra.mxu0 0.0
  %1132 = vmatprep.subr.mxu0 0.0
  %1133 = vmatpush2.msra.mxu0 0.0
  %1134 = vmatprep.subr.mxu0 0.0
  %1135 = vmatpush2.msra.mxu0 0.0
  %1136 = vmatprep.mubr.f32.mxu0 0.0
  %1137 = vmatmul.mubr.f32.gmra.mxu0 %v1070
  %v1138 = vpop.f32.mrf.mxu0
  %v1139 = vadd.f32 0.0, %v1138
  %v1140 = vpop.f32.mrf.mxu0
  %1141 = vdwg.mxu0
  %1142 = vrot.lane.b32.xlu0 %v130, 98
  %v1143 = vpop.permute.xlu0 %1142
  %1144 = vrot.lane.b32.xlu0 %v130, 58
  %v1145 = vpop.permute.xlu0 %1144
  %v1146 = vsel %vm155, %v1143, 0
  %v1148 = vsel %vm155, %v1145, 0
  %1150 = vmatprep.subr.mxu0 0.0
  %1151 = vmatpush1.xpose.msra.mxu0 0.0
  %1152 = vmatprep.subr.mxu0 0.0
  %1153 = vmatpush1.xpose.msra.mxu0 0.0
  %1154 = vmatprep.subr.mxu0 0.0
  %1155 = vmatpush1.xpose.msra.mxu0 0.0
  %1156 = vmatprep.subr.mxu0 0.0
  %1157 = vmatpush1.xpose.msra.mxu0 0.0
  %1158 = vmatprep.subr.mxu0 0.0
  %1159 = vmatpush1.xpose.msra.mxu0 0.0
  %1160 = vmatprep.subr.mxu0 0.0
  %1161 = vmatpush1.xpose.msra.mxu0 0.0
  %1162 = vmatprep.subr.mxu0 0.0
  %1163 = vmatpush1.xpose.msra.mxu0 0.0
  %1164 = vmatprep.subr.mxu0 0.0
  %1165 = vmatpush1.xpose.msra.mxu0 0.0
  %1166 = vmatprep.subr.mxu0 0.0
  %1167 = vmatpush1.xpose.msra.mxu0 0.0
  %1168 = vmatprep.subr.mxu0 0.0
  %1169 = vmatpush1.xpose.msra.mxu0 0.0
  %1170 = vmatprep.subr.mxu0 0.0
  %1171 = vmatpush1.xpose.msra.mxu0 0.0
  %1172 = vmatprep.subr.mxu0 0.0
  %1173 = vmatpush1.xpose.msra.mxu0 0.0
  %1174 = vmatprep.subr.mxu0 0.0
  %1175 = vmatpush1.xpose.msra.mxu0 0.0
  %1176 = vmatprep.subr.mxu0 0.0
  %1177 = vmatpush1.xpose.msra.mxu0 0.0
  %1178 = vmatprep.subr.mxu0 0.0
  %1179 = vmatpush1.xpose.msra.mxu0 0.0
  %1180 = vmatprep.subr.mxu0 0.0
  %1181 = vmatpush1.xpose.msra.mxu0 %v1148
  %1182 = vmatprep.subr.mxu0 0.0
  %1183 = vmatpush2.xpose.msra.mxu0 0.0
  %1184 = vmatprep.subr.mxu0 0.0
  %1185 = vmatpush2.xpose.msra.mxu0 0.0
  %1186 = vmatprep.subr.mxu0 0.0
  %1187 = vmatpush2.xpose.msra.mxu0 0.0
  %1188 = vmatprep.subr.mxu0 0.0
  %1189 = vmatpush2.xpose.msra.mxu0 0.0
  %1190 = vmatprep.subr.mxu0 0.0
  %1191 = vmatpush2.xpose.msra.mxu0 0.0
  %1192 = vmatprep.subr.mxu0 0.0
  %1193 = vmatpush2.xpose.msra.mxu0 0.0
  %1194 = vmatprep.subr.mxu0 0.0
  %1195 = vmatpush2.xpose.msra.mxu0 0.0
  %1196 = vmatprep.subr.mxu0 0.0
  %1197 = vmatpush2.xpose.msra.mxu0 0.0
  %1198 = vmatprep.subr.mxu0 0.0
  %1199 = vmatpush2.xpose.msra.mxu0 0.0
  %1200 = vmatprep.subr.mxu0 0.0
  %1201 = vmatpush2.xpose.msra.mxu0 0.0
  %1202 = vmatprep.subr.mxu0 0.0
  %1203 = vmatpush2.xpose.msra.mxu0 0.0
  %1204 = vmatprep.subr.mxu0 0.0
  %1205 = vmatpush2.xpose.msra.mxu0 0.0
  %1206 = vmatprep.subr.mxu0 0.0
  %1207 = vmatpush2.xpose.msra.mxu0 0.0
  %1208 = vmatprep.subr.mxu0 0.0
  %1209 = vmatpush2.xpose.msra.mxu0 0.0
  %1210 = vmatprep.subr.mxu0 0.0
  %1211 = vmatpush2.xpose.msra.mxu0 0.0
  %1212 = vmatprep.subr.mxu0 0.0
  %1213 = vmatpush2.xpose.msra.mxu0 0.0
  %1214 = vmatprep.mubr.f32.mxu0 0.0
  %1215 = vmatmul.mubr.f32.gmra.mxu0 %v1146
  %v1216 = vpop.f32.mrf.mxu0
  %v1217 = vadd.f32 %v145, %v1216
  %v1218 = vpop.f32.mrf.mxu0
  %1219 = vdwg.mxu0
  %1220 = vrot.lane.b32.xlu0 %v135, 98
  %v1221 = vpop.permute.xlu0 %1220
  %1222 = vrot.lane.b32.xlu0 %v135, 58
  %v1223 = vpop.permute.xlu0 %1222
  %v1224 = vsel %vm155, %v1221, 0
  %v1226 = vsel %vm155, %v1223, 0
  %1228 = vmatprep.subr.mxu0 0.0
  %1229 = vmatpush1.xpose.msra.mxu0 0.0
  %1230 = vmatprep.subr.mxu0 0.0
  %1231 = vmatpush1.xpose.msra.mxu0 0.0
  %1232 = vmatprep.subr.mxu0 0.0
  %1233 = vmatpush1.xpose.msra.mxu0 0.0
  %1234 = vmatprep.subr.mxu0 0.0
  %1235 = vmatpush1.xpose.msra.mxu0 0.0
  %1236 = vmatprep.subr.mxu0 0.0
  %1237 = vmatpush1.xpose.msra.mxu0 0.0
  %1238 = vmatprep.subr.mxu0 0.0
  %1239 = vmatpush1.xpose.msra.mxu0 0.0
  %1240 = vmatprep.subr.mxu0 0.0
  %1241 = vmatpush1.xpose.msra.mxu0 0.0
  %1242 = vmatprep.subr.mxu0 0.0
  %1243 = vmatpush1.xpose.msra.mxu0 0.0
  %1244 = vmatprep.subr.mxu0 0.0
  %1245 = vmatpush1.xpose.msra.mxu0 0.0
  %1246 = vmatprep.subr.mxu0 0.0
  %1247 = vmatpush1.xpose.msra.mxu0 0.0
  %1248 = vmatprep.subr.mxu0 0.0
  %1249 = vmatpush1.xpose.msra.mxu0 0.0
  %1250 = vmatprep.subr.mxu0 0.0
  %1251 = vmatpush1.xpose.msra.mxu0 0.0
  %1252 = vmatprep.subr.mxu0 0.0
  %1253 = vmatpush1.xpose.msra.mxu0 0.0
  %1254 = vmatprep.subr.mxu0 0.0
  %1255 = vmatpush1.xpose.msra.mxu0 0.0
  %1256 = vmatprep.subr.mxu0 0.0
  %1257 = vmatpush1.xpose.msra.mxu0 0.0
  %1258 = vmatprep.subr.mxu0 0.0
  %1259 = vmatpush1.xpose.msra.mxu0 %v1226
  %1260 = vmatprep.subr.mxu0 0.0
  %1261 = vmatpush2.xpose.msra.mxu0 0.0
  %1262 = vmatprep.subr.mxu0 0.0
  %1263 = vmatpush2.xpose.msra.mxu0 0.0
  %1264 = vmatprep.subr.mxu0 0.0
  %1265 = vmatpush2.xpose.msra.mxu0 0.0
  %1266 = vmatprep.subr.mxu0 0.0
  %1267 = vmatpush2.xpose.msra.mxu0 0.0
  %1268 = vmatprep.subr.mxu0 0.0
  %1269 = vmatpush2.xpose.msra.mxu0 0.0
  %1270 = vmatprep.subr.mxu0 0.0
  %1271 = vmatpush2.xpose.msra.mxu0 0.0
  %1272 = vmatprep.subr.mxu0 0.0
  %1273 = vmatpush2.xpose.msra.mxu0 0.0
  %1274 = vmatprep.subr.mxu0 0.0
  %1275 = vmatpush2.xpose.msra.mxu0 0.0
  %1276 = vmatprep.subr.mxu0 0.0
  %1277 = vmatpush2.xpose.msra.mxu0 0.0
  %1278 = vmatprep.subr.mxu0 0.0
  %1279 = vmatpush2.xpose.msra.mxu0 0.0
  %1280 = vmatprep.subr.mxu0 0.0
  %1281 = vmatpush2.xpose.msra.mxu0 0.0
  %1282 = vmatprep.subr.mxu0 0.0
  %1283 = vmatpush2.xpose.msra.mxu0 0.0
  %1284 = vmatprep.subr.mxu0 0.0
  %1285 = vmatpush2.xpose.msra.mxu0 0.0
  %1286 = vmatprep.subr.mxu0 0.0
  %1287 = vmatpush2.xpose.msra.mxu0 0.0
  %1288 = vmatprep.subr.mxu0 0.0
  %1289 = vmatpush2.xpose.msra.mxu0 0.0
  %1290 = vmatprep.subr.mxu0 0.0
  %1291 = vmatpush2.xpose.msra.mxu0 0.0
  %1292 = vmatprep.mubr.f32.mxu0 0.0
  %1293 = vmatmul.mubr.f32.gmra.mxu0 %v1224
  %v1294 = vpop.f32.mrf.mxu0
  %v1295 = vadd.f32 %v149, %v1294
  %v1296 = vpop.f32.mrf.mxu0
  %1297 = vdwg.mxu0
  %v1298 = vsel %vm307, %v1217, -inf
  %1299 = vmax.xlane.f32.xlu0 %v1298
  %v1300 = vpop.xlane.xlu0 %1299
  %v1301 = vsel %vm307, %v1295, -inf
  %1302 = vmax.xlane.f32.xlu0 %v1301
  %v1303 = vpop.xlane.xlu0 %1302
  %v1304 = vsub.f32 %v1217, %v1300
  %v1305 = vsub.f32 %v1295, %v1303
  %v1306 = vmul.f32 %v1304, 1.442695
  %v1307 = vpow.pop %v1306
  %v1308 = vmul.f32 %v1305, 1.442695
  %v1309 = vpow.pop %v1308
  %v1310 = vsel %vm307, %v1307, 0.0
  %1311 = vadd.xlane.f32.xlu0 %v1310
  %v1312 = vpop.xlane.xlu0 %1311
  %v1313 = vsel %vm307, %v1309, 0.0
  %1314 = vadd.xlane.f32.xlu0 %v1313
  %v1315 = vpop.xlane.xlu0 %1314
  %v1316 = vrcp.pop %v1312
  %v1317 = vrcp.pop %v1315
  %v1318 = vmul.f32 %v1307, %v1316
  %v1319 = vmul.f32 %v1309, %v1317
  %1320 = vrot.lane.b32.xlu0 %v130, 18
  %v1321 = vpop.permute.xlu0 %1320
  %v1324 = vsel %vm307, %v1318, 0
  %1326 = vmatprep.subr.mxu0 0.0
  %1327 = vmatpush1.msra.mxu0 0.0
  %1328 = vmatprep.subr.mxu0 0.0
  %1329 = vmatpush1.msra.mxu0 0.0
  %1330 = vmatprep.subr.mxu0 0.0
  %1331 = vmatpush1.msra.mxu0 0.0
  %1332 = vmatprep.subr.mxu0 0.0
  %1333 = vmatpush1.msra.mxu0 0.0
  %1334 = vmatprep.subr.mxu0 0.0
  %1335 = vmatpush1.msra.mxu0 0.0
  %1336 = vmatprep.subr.mxu0 0.0
  %1337 = vmatpush1.msra.mxu0 0.0
  %1338 = vmatprep.subr.mxu0 0.0
  %1339 = vmatpush1.msra.mxu0 0.0
  %1340 = vmatprep.subr.mxu0 0.0
  %1341 = vmatpush1.msra.mxu0 0.0
  %1342 = vmatprep.subr.mxu0 0.0
  %1343 = vmatpush1.msra.mxu0 0.0
  %1344 = vmatprep.subr.mxu0 0.0
  %1345 = vmatpush1.msra.mxu0 0.0
  %1346 = vmatprep.subr.mxu0 0.0
  %1347 = vmatpush1.msra.mxu0 0.0
  %1348 = vmatprep.subr.mxu0 0.0
  %1349 = vmatpush1.msra.mxu0 0.0
  %1350 = vmatprep.subr.mxu0 0.0
  %1351 = vmatpush1.msra.mxu0 0.0
  %1352 = vmatprep.subr.mxu0 0.0
  %1353 = vmatpush1.msra.mxu0 0.0
  %1354 = vmatprep.subr.mxu0 0.0
  %1355 = vmatpush1.msra.mxu0 0.0
  %1356 = vmatprep.subr.mxu0 0.0
  %1357 = vmatpush1.msra.mxu0 %v1321
  %1358 = vmatprep.subr.mxu0 0.0
  %1359 = vmatpush2.msra.mxu0 0.0
  %1360 = vmatprep.subr.mxu0 0.0
  %1361 = vmatpush2.msra.mxu0 0.0
  %1362 = vmatprep.subr.mxu0 0.0
  %1363 = vmatpush2.msra.mxu0 0.0
  %1364 = vmatprep.subr.mxu0 0.0
  %1365 = vmatpush2.msra.mxu0 0.0
  %1366 = vmatprep.subr.mxu0 0.0
  %1367 = vmatpush2.msra.mxu0 0.0
  %1368 = vmatprep.subr.mxu0 0.0
  %1369 = vmatpush2.msra.mxu0 0.0
  %1370 = vmatprep.subr.mxu0 0.0
  %1371 = vmatpush2.msra.mxu0 0.0
  %1372 = vmatprep.subr.mxu0 0.0
  %1373 = vmatpush2.msra.mxu0 0.0
  %1374 = vmatprep.subr.mxu0 0.0
  %1375 = vmatpush2.msra.mxu0 0.0
  %1376 = vmatprep.subr.mxu0 0.0
  %1377 = vmatpush2.msra.mxu0 0.0
  %1378 = vmatprep.subr.mxu0 0.0
  %1379 = vmatpush2.msra.mxu0 0.0
  %1380 = vmatprep.subr.mxu0 0.0
  %1381 = vmatpush2.msra.mxu0 0.0
  %1382 = vmatprep.subr.mxu0 0.0
  %1383 = vmatpush2.msra.mxu0 0.0
  %1384 = vmatprep.subr.mxu0 0.0
  %1385 = vmatpush2.msra.mxu0 0.0
  %1386 = vmatprep.subr.mxu0 0.0
  %1387 = vmatpush2.msra.mxu0 0.0
  %1388 = vmatprep.subr.mxu0 0.0
  %1389 = vmatpush2.msra.mxu0 0.0
  %1390 = vmatprep.mubr.f32.mxu0 0.0
  %1391 = vmatmul.mubr.f32.gmra.mxu0 %v1324
  %v1392 = vpop.f32.mrf.mxu0
  %v1393 = vadd.f32 0.0, %v1392
  %v1394 = vpop.f32.mrf.mxu0
  %1395 = vdwg.mxu0
  %1396 = vrot.lane.b32.xlu0 %v135, 18
  %v1397 = vpop.permute.xlu0 %1396
  %v1400 = vsel %vm307, %v1319, 0
  %1402 = vmatprep.subr.mxu0 0.0
  %1403 = vmatpush1.msra.mxu0 0.0
  %1404 = vmatprep.subr.mxu0 0.0
  %1405 = vmatpush1.msra.mxu0 0.0
  %1406 = vmatprep.subr.mxu0 0.0
  %1407 = vmatpush1.msra.mxu0 0.0
  %1408 = vmatprep.subr.mxu0 0.0
  %1409 = vmatpush1.msra.mxu0 0.0
  %1410 = vmatprep.subr.mxu0 0.0
  %1411 = vmatpush1.msra.mxu0 0.0
  %1412 = vmatprep.subr.mxu0 0.0
  %1413 = vmatpush1.msra.mxu0 0.0
  %1414 = vmatprep.subr.mxu0 0.0
  %1415 = vmatpush1.msra.mxu0 0.0
  %1416 = vmatprep.subr.mxu0 0.0
  %1417 = vmatpush1.msra.mxu0 0.0
  %1418 = vmatprep.subr.mxu0 0.0
  %1419 = vmatpush1.msra.mxu0 0.0
  %1420 = vmatprep.subr.mxu0 0.0
  %1421 = vmatpush1.msra.mxu0 0.0
  %1422 = vmatprep.subr.mxu0 0.0
  %1423 = vmatpush1.msra.mxu0 0.0
  %1424 = vmatprep.subr.mxu0 0.0
  %1425 = vmatpush1.msra.mxu0 0.0
  %1426 = vmatprep.subr.mxu0 0.0
  %1427 = vmatpush1.msra.mxu0 0.0
  %1428 = vmatprep.subr.mxu0 0.0
  %1429 = vmatpush1.msra.mxu0 0.0
  %1430 = vmatprep.subr.mxu0 0.0
  %1431 = vmatpush1.msra.mxu0 0.0
  %1432 = vmatprep.subr.mxu0 0.0
  %1433 = vmatpush1.msra.mxu0 %v1397
  %1434 = vmatprep.subr.mxu0 0.0
  %1435 = vmatpush2.msra.mxu0 0.0
  %1436 = vmatprep.subr.mxu0 0.0
  %1437 = vmatpush2.msra.mxu0 0.0
  %1438 = vmatprep.subr.mxu0 0.0
  %1439 = vmatpush2.msra.mxu0 0.0
  %1440 = vmatprep.subr.mxu0 0.0
  %1441 = vmatpush2.msra.mxu0 0.0
  %1442 = vmatprep.subr.mxu0 0.0
  %1443 = vmatpush2.msra.mxu0 0.0
  %1444 = vmatprep.subr.mxu0 0.0
  %1445 = vmatpush2.msra.mxu0 0.0
  %1446 = vmatprep.subr.mxu0 0.0
  %1447 = vmatpush2.msra.mxu0 0.0
  %1448 = vmatprep.subr.mxu0 0.0
  %1449 = vmatpush2.msra.mxu0 0.0
  %1450 = vmatprep.subr.mxu0 0.0
  %1451 = vmatpush2.msra.mxu0 0.0
  %1452 = vmatprep.subr.mxu0 0.0
  %1453 = vmatpush2.msra.mxu0 0.0
  %1454 = vmatprep.subr.mxu0 0.0
  %1455 = vmatpush2.msra.mxu0 0.0
  %1456 = vmatprep.subr.mxu0 0.0
  %1457 = vmatpush2.msra.mxu0 0.0
  %1458 = vmatprep.subr.mxu0 0.0
  %1459 = vmatpush2.msra.mxu0 0.0
  %1460 = vmatprep.subr.mxu0 0.0
  %1461 = vmatpush2.msra.mxu0 0.0
  %1462 = vmatprep.subr.mxu0 0.0
  %1463 = vmatpush2.msra.mxu0 0.0
  %1464 = vmatprep.subr.mxu0 0.0
  %1465 = vmatpush2.msra.mxu0 0.0
  %1466 = vmatprep.mubr.f32.mxu0 0.0
  %1467 = vmatmul.mubr.f32.gmra.mxu0 %v1400
  %v1468 = vpop.f32.mrf.mxu0
  %v1469 = vadd.f32 0.0, %v1468
  %v1470 = vpop.f32.mrf.mxu0
  %1471 = vdwg.mxu0
  %1474 = vrot.lane.b32.xlu0 %v733, 10
  %v1475 = vpop.permute.xlu0 %1474
  %1476 = vrot.lane.b32.xlu0 %v809, 10
  %v1477 = vpop.permute.xlu0 %1476
  %1482 = vrot.lane.b32.xlu0 %v1063, 20
  %v1483 = vpop.permute.xlu0 %1482
  %1484 = vrot.lane.b32.xlu0 %v1139, 20
  %v1485 = vpop.permute.xlu0 %1484
  %1490 = vrot.lane.b32.xlu0 %v1393, 30
  %v1491 = vpop.permute.xlu0 %1490
  %1492 = vrot.lane.b32.xlu0 %v1469, 30
  %v1493 = vpop.permute.xlu0 %1492
  %v1496 = vsel %vm155, %v403, %v1475
  %v1497 = vsel %vm155, %v479, %v1477
  %vm1498 = vcmask 162816
  %v1499 = vsel %vm1498, %v1496, %v1483
  %v1500 = vsel %vm1498, %v1497, %v1485
  %vm1501 = vcmask 244736
  %v1502 = vsel %vm1501, %v1499, %v1491
  %v1503 = vsel %vm1501, %v1500, %v1493
  %v1504 = vld [vmem:[%s5] sm:$0xff]
  %v1505 = vld [vmem:[%s5 + $0x8] sm:$0xff]
  %v1506 = vld [vmem:[%s5 + $0x10] sm:$0xff]
  %v1507 = vld [vmem:[%s5 + $0x18] sm:$0xff]
  %v1508 = vld [vmem:[%s5 + $0x20] sm:$0xff]
  %v1509 = vlaneseq
  %v1510 = vshrl.u32 %v1509, 7
  %v1511 = vsub.s32 0, %v1510
  %v1512 = vrot.slane %v38, %v1511
  %v1514 = vsel %vm56, %v1502, 0
  %v1517 = vsel %vm56, %v1503, 0
  %1519 = vmatprep.subr.mxu0 0.0
  %1520 = vmatpush1.msra.mxu0 0.0
  %1521 = vmatprep.subr.mxu0 0.0
  %1522 = vmatpush1.msra.mxu0 0.0
  %1523 = vmatprep.subr.mxu0 0.0
  %1524 = vmatpush1.msra.mxu0 0.0
  %1525 = vmatprep.subr.mxu0 0.0
  %1526 = vmatpush1.msra.mxu0 0.0
  %1527 = vmatprep.subr.mxu0 0.0
  %1528 = vmatpush1.msra.mxu0 0.0
  %1529 = vmatprep.subr.mxu0 0.0
  %1530 = vmatpush1.msra.mxu0 0.0
  %1531 = vmatprep.subr.mxu0 0.0
  %1532 = vmatpush1.msra.mxu0 0.0
  %1533 = vmatprep.subr.mxu0 0.0
  %1534 = vmatpush1.msra.mxu0 0.0
  %1535 = vmatprep.subr.mxu0 0.0
  %1536 = vmatpush1.msra.mxu0 0.0
  %1537 = vmatprep.subr.mxu0 0.0
  %1538 = vmatpush1.msra.mxu0 0.0
  %1539 = vmatprep.subr.mxu0 0.0
  %1540 = vmatpush1.msra.mxu0 0.0
  %1541 = vmatprep.subr.mxu0 0.0
  %1542 = vmatpush1.msra.mxu0 %v1508
  %1543 = vmatprep.subr.mxu0 0.0
  %1544 = vmatpush1.msra.mxu0 %v1507
  %1545 = vmatprep.subr.mxu0 0.0
  %1546 = vmatpush1.msra.mxu0 %v1506
  %1547 = vmatprep.subr.mxu0 0.0
  %1548 = vmatpush1.msra.mxu0 %v1505
  %1549 = vmatprep.subr.mxu0 0.0
  %1550 = vmatpush1.msra.mxu0 %v1504
  %1551 = vmatprep.subr.mxu0 0.0
  %1552 = vmatpush2.msra.mxu0 0.0
  %1553 = vmatprep.subr.mxu0 0.0
  %1554 = vmatpush2.msra.mxu0 0.0
  %1555 = vmatprep.subr.mxu0 0.0
  %1556 = vmatpush2.msra.mxu0 0.0
  %1557 = vmatprep.subr.mxu0 0.0
  %1558 = vmatpush2.msra.mxu0 0.0
  %1559 = vmatprep.subr.mxu0 0.0
  %1560 = vmatpush2.msra.mxu0 0.0
  %1561 = vmatprep.subr.mxu0 0.0
  %1562 = vmatpush2.msra.mxu0 0.0
  %1563 = vmatprep.subr.mxu0 0.0
  %1564 = vmatpush2.msra.mxu0 0.0
  %1565 = vmatprep.subr.mxu0 0.0
  %1566 = vmatpush2.msra.mxu0 0.0
  %1567 = vmatprep.subr.mxu0 0.0
  %1568 = vmatpush2.msra.mxu0 0.0
  %1569 = vmatprep.subr.mxu0 0.0
  %1570 = vmatpush2.msra.mxu0 0.0
  %1571 = vmatprep.subr.mxu0 0.0
  %1572 = vmatpush2.msra.mxu0 0.0
  %1573 = vmatprep.subr.mxu0 0.0
  %1574 = vmatpush2.msra.mxu0 0.0
  %1575 = vmatprep.subr.mxu0 0.0
  %1576 = vmatpush2.msra.mxu0 0.0
  %1577 = vmatprep.subr.mxu0 0.0
  %1578 = vmatpush2.msra.mxu0 0.0
  %1579 = vmatprep.subr.mxu0 0.0
  %1580 = vmatpush2.msra.mxu0 0.0
  %1581 = vmatprep.subr.mxu0 0.0
  %1582 = vmatpush2.msra.mxu0 0.0
  %1583 = vmatprep.mubr.f32.mxu0 0.0
  %1584 = vmatmul.mubr.f32.gmra.mxu0 %v1514
  %v1585 = vpop.f32.mrf.mxu0
  %v1586 = vadd.f32 %v1512, %v1585
  %v1587 = vpop.f32.mrf.mxu0
  %1588 = vmatprep.mubr.f32.mxu0 0.0
  %1589 = vmatmul.mubr.f32.gmra.mxu0 %v1517
  %v1590 = vpop.f32.mrf.mxu0
  %v1591 = vadd.f32 %v1512, %v1590
  %v1592 = vpop.f32.mrf.mxu0
  %1593 = vdwg.mxu0
  %v1594 = vadd.f32 %v42, %v1586
  %v1595 = vadd.f32 %v43, %v1591
  %v1596 = vsel %vm56, %v1594, 0.0
  %1597 = vadd.xlane.f32.xlu0 %v1596
  %v1598 = vpop.xlane.xlu0 %1597
  %v1599 = vsel %vm56, %v1595, 0.0
  %1600 = vadd.xlane.f32.xlu0 %v1599
  %v1601 = vpop.xlane.xlu0 %1600
  %v1602 = vmul.f32 %v1598, 0.025
  %v1603 = vmul.f32 %v1601, 0.025
  %v1604 = vsub.f32 %v1594, %v1602
  %v1605 = vsub.f32 %v1595, %v1603
  %v1606 = vmul.f32 %v1604, %v1604
  %v1607 = vmul.f32 %v1605, %v1605
  %v1608 = vsel %vm56, %v1606, 0.0
  %1609 = vadd.xlane.f32.xlu0 %v1608
  %v1610 = vpop.xlane.xlu0 %1609
  %v1611 = vsel %vm56, %v1607, 0.0
  %1612 = vadd.xlane.f32.xlu0 %v1611
  %v1613 = vpop.xlane.xlu0 %1612
  %v1614 = vmul.f32 %v1610, 0.025
  %v1615 = vmul.f32 %v1613, 0.025
  %v1616 = vadd.f32 %v1614, 1e-05
  %v1617 = vadd.f32 %v1615, 1e-05
  %v1618 = vrsqrt.pop %v1616
  %v1619 = vrsqrt.pop %v1617
  %v1620 = vmul.f32 %v1604, %v1618
  %v1621 = vmul.f32 %v1605, %v1619
  %v1622 = vlaneseq
  %v1623 = vshrl.u32 %v1622, 7
  %v1624 = vsub.s32 1, %v1623
  %v1625 = vrot.slane %v38, %v1624
  %v1626 = vmul.f32 %v1620, %v1625
  %v1627 = vmul.f32 %v1621, %v1625
  %v1628 = vlaneseq
  %v1629 = vshrl.u32 %v1628, 7
  %v1630 = vsub.s32 2, %v1629
  %v1631 = vrot.slane %v38, %v1630
  %v1632 = vadd.f32 %v1626, %v1631
  %v1633 = vadd.f32 %v1627, %v1631
  %v1634 = vld [vmem:[%s6] sm:$0xff]
  %v1635 = vld [vmem:[%s6 + $0x8] sm:$0xff]
  %v1636 = vld [vmem:[%s6 + $0x10] sm:$0xff]
  %v1637 = vld [vmem:[%s6 + $0x18] sm:$0xff]
  %v1638 = vld [vmem:[%s6 + $0x20] sm:$0xff]
  %v1639 = vld [vmem:[%s6 + $0x28] sm:$0xff]
  %v1640 = vld [vmem:[%s6 + $0x30] sm:$0xff]
  %v1641 = vld [vmem:[%s6 + $0x38] sm:$0xff]
  %v1642 = vld [vmem:[%s6 + $0x40] sm:$0xff]
  %v1643 = vld [vmem:[%s6 + $0x48] sm:$0xff]
  %v1644 = vld [vmem:[%s7] sm:$0x3]
  %v1646 = vlaneseq
  %v1647 = vshrl.u32 %v1646, 7
  %v1648 = vsub.s32 0, %v1647
  %v1649 = vrot.slane %v1644, %v1648
  %v1650 = vlaneseq
  %v1651 = vshrl.u32 %v1650, 7
  %v1652 = vsub.s32 1, %v1651
  %v1653 = vrot.slane %v1644, %v1652
  %v1657 = vsel %vm56, %v1632, 0
  %v1660 = vsel %vm56, %v1633, 0
  %1662 = vmatprep.subr.mxu0 0.0
  %1663 = vmatpush1.msra.mxu0 0.0
  %1664 = vmatprep.subr.mxu0 0.0
  %1665 = vmatpush1.msra.mxu0 0.0
  %1666 = vmatprep.subr.mxu0 0.0
  %1667 = vmatpush1.msra.mxu0 0.0
  %1668 = vmatprep.subr.mxu0 0.0
  %1669 = vmatpush1.msra.mxu0 0.0
  %1670 = vmatprep.subr.mxu0 0.0
  %1671 = vmatpush1.msra.mxu0 0.0
  %1672 = vmatprep.subr.mxu0 0.0
  %1673 = vmatpush1.msra.mxu0 0.0
  %1674 = vmatprep.subr.mxu0 0.0
  %1675 = vmatpush1.msra.mxu0 0.0
  %1676 = vmatprep.subr.mxu0 0.0
  %1677 = vmatpush1.msra.mxu0 0.0
  %1678 = vmatprep.subr.mxu0 0.0
  %1679 = vmatpush1.msra.mxu0 0.0
  %1680 = vmatprep.subr.mxu0 0.0
  %1681 = vmatpush1.msra.mxu0 0.0
  %1682 = vmatprep.subr.mxu0 0.0
  %1683 = vmatpush1.msra.mxu0 0.0
  %1684 = vmatprep.subr.mxu0 %v1643
  %1685 = vmatpush1.msra.mxu0 %v1642
  %1686 = vmatprep.subr.mxu0 %v1641
  %1687 = vmatpush1.msra.mxu0 %v1640
  %1688 = vmatprep.subr.mxu0 %v1639
  %1689 = vmatpush1.msra.mxu0 %v1638
  %1690 = vmatprep.subr.mxu0 %v1637
  %1691 = vmatpush1.msra.mxu0 %v1636
  %1692 = vmatprep.subr.mxu0 %v1635
  %1693 = vmatpush1.msra.mxu0 %v1634
  %1694 = vmatprep.subr.mxu0 0.0
  %1695 = vmatpush2.msra.mxu0 0.0
  %1696 = vmatprep.subr.mxu0 0.0
  %1697 = vmatpush2.msra.mxu0 0.0
  %1698 = vmatprep.subr.mxu0 0.0
  %1699 = vmatpush2.msra.mxu0 0.0
  %1700 = vmatprep.subr.mxu0 0.0
  %1701 = vmatpush2.msra.mxu0 0.0
  %1702 = vmatprep.subr.mxu0 0.0
  %1703 = vmatpush2.msra.mxu0 0.0
  %1704 = vmatprep.subr.mxu0 0.0
  %1705 = vmatpush2.msra.mxu0 0.0
  %1706 = vmatprep.subr.mxu0 0.0
  %1707 = vmatpush2.msra.mxu0 0.0
  %1708 = vmatprep.subr.mxu0 0.0
  %1709 = vmatpush2.msra.mxu0 0.0
  %1710 = vmatprep.subr.mxu0 0.0
  %1711 = vmatpush2.msra.mxu0 0.0
  %1712 = vmatprep.subr.mxu0 0.0
  %1713 = vmatpush2.msra.mxu0 0.0
  %1714 = vmatprep.subr.mxu0 0.0
  %1715 = vmatpush2.msra.mxu0 0.0
  %1716 = vmatprep.subr.mxu0 0.0
  %1717 = vmatpush2.msra.mxu0 0.0
  %1718 = vmatprep.subr.mxu0 0.0
  %1719 = vmatpush2.msra.mxu0 0.0
  %1720 = vmatprep.subr.mxu0 0.0
  %1721 = vmatpush2.msra.mxu0 0.0
  %1722 = vmatprep.subr.mxu0 0.0
  %1723 = vmatpush2.msra.mxu0 0.0
  %1724 = vmatprep.subr.mxu0 0.0
  %1725 = vmatpush2.msra.mxu0 0.0
  %1726 = vmatprep.mubr.f32.mxu0 0.0
  %1727 = vmatmul.mubr.f32.gmra.mxu0 %v1657
  %v1728 = vpop.f32.mrf.mxu0
  %v1729 = vadd.f32 %v1649, %v1728
  %v1730 = vpop.f32.mrf.mxu0
  %v1731 = vadd.f32 %v1653, %v1730
  %1732 = vmatprep.mubr.f32.mxu0 0.0
  %1733 = vmatmul.mubr.f32.gmra.mxu0 %v1660
  %v1734 = vpop.f32.mrf.mxu0
  %v1735 = vadd.f32 %v1649, %v1734
  %v1736 = vpop.f32.mrf.mxu0
  %v1737 = vadd.f32 %v1653, %v1736
  %1738 = vdwg.mxu0
  %v1739 = vmax.f32 %v1729, 0.0
  %v1740 = vmax.f32 %v1731, 0.0
  %v1741 = vmax.f32 %v1735, 0.0
  %v1742 = vmax.f32 %v1737, 0.0
  %v1743 = vld [vmem:[%s8] sm:$0xff]
  %v1744 = vld [vmem:[%s8 + $0x8] sm:$0xff]
  %v1745 = vld [vmem:[%s8 + $0x10] sm:$0xff]
  %v1746 = vld [vmem:[%s8 + $0x18] sm:$0xff]
  %v1747 = vld [vmem:[%s8 + $0x20] sm:$0xff]
  %v1748 = vld [vmem:[%s8 + $0x28] sm:$0xff]
  %v1749 = vld [vmem:[%s8 + $0x30] sm:$0xff]
  %v1750 = vld [vmem:[%s8 + $0x38] sm:$0xff]
  %v1751 = vld [vmem:[%s8 + $0x40] sm:$0xff]
  %v1752 = vld [vmem:[%s8 + $0x48] sm:$0xff]
  %v1753 = vld [vmem:[%s8 + $0x50] sm:$0xff]
  %v1754 = vld [vmem:[%s8 + $0x58] sm:$0xff]
  %v1755 = vld [vmem:[%s8 + $0x60] sm:$0xff]
  %v1756 = vld [vmem:[%s8 + $0x68] sm:$0xff]
  %v1757 = vld [vmem:[%s8 + $0x70] sm:$0xff]
  %v1758 = vld [vmem:[%s8 + $0x78] sm:$0xff]
  %v1759 = vld [vmem:[%s8 + $0x80] sm:$0xff]
  %v1760 = vld [vmem:[%s8 + $0x88] sm:$0xff]
  %v1761 = vld [vmem:[%s8 + $0x90] sm:$0xff]
  %v1762 = vld [vmem:[%s8 + $0x98] sm:$0xff]
  %v1763 = vlaneseq
  %v1764 = vshrl.u32 %v1763, 7
  %v1765 = vsub.s32 3, %v1764
  %v1766 = vrot.slane %v38, %v1765
  %vm1767 = vcmask 261120
  %v1769 = vsel %vm1767, %v1740, 0
  %v1772 = vsel %vm1767, %v1742, 0
  %1774 = vmatprep.subr.mxu0 0.0
  %1775 = vmatpush1.msra.mxu0 %v1758
  %1776 = vmatprep.subr.mxu0 0.0
  %1777 = vmatpush1.msra.mxu0 %v1757
  %1778 = vmatprep.subr.mxu0 0.0
  %1779 = vmatpush1.msra.mxu0 %v1756
  %1780 = vmatprep.subr.mxu0 0.0
  %1781 = vmatpush1.msra.mxu0 %v1755
  %1782 = vmatprep.subr.mxu0 0.0
  %1783 = vmatpush1.msra.mxu0 %v1754
  %1784 = vmatprep.subr.mxu0 0.0
  %1785 = vmatpush1.msra.mxu0 %v1753
  %1786 = vmatprep.subr.mxu0 0.0
  %1787 = vmatpush1.msra.mxu0 %v1752
  %1788 = vmatprep.subr.mxu0 0.0
  %1789 = vmatpush1.msra.mxu0 %v1751
  %1790 = vmatprep.subr.mxu0 0.0
  %1791 = vmatpush1.msra.mxu0 %v1750
  %1792 = vmatprep.subr.mxu0 0.0
  %1793 = vmatpush1.msra.mxu0 %v1749
  %1794 = vmatprep.subr.mxu0 0.0
  %1795 = vmatpush1.msra.mxu0 %v1748
  %1796 = vmatprep.subr.mxu0 0.0
  %1797 = vmatpush1.msra.mxu0 %v1747
  %1798 = vmatprep.subr.mxu0 0.0
  %1799 = vmatpush1.msra.mxu0 %v1746
  %1800 = vmatprep.subr.mxu0 0.0
  %1801 = vmatpush1.msra.mxu0 %v1745
  %1802 = vmatprep.subr.mxu0 0.0
  %1803 = vmatpush1.msra.mxu0 %v1744
  %1804 = vmatprep.subr.mxu0 0.0
  %1805 = vmatpush1.msra.mxu0 %v1743
  %1806 = vmatprep.subr.mxu0 0.0
  %1807 = vmatpush2.msra.mxu0 0.0
  %1808 = vmatprep.subr.mxu0 0.0
  %1809 = vmatpush2.msra.mxu0 0.0
  %1810 = vmatprep.subr.mxu0 0.0
  %1811 = vmatpush2.msra.mxu0 0.0
  %1812 = vmatprep.subr.mxu0 0.0
  %1813 = vmatpush2.msra.mxu0 0.0
  %1814 = vmatprep.subr.mxu0 0.0
  %1815 = vmatpush2.msra.mxu0 0.0
  %1816 = vmatprep.subr.mxu0 0.0
  %1817 = vmatpush2.msra.mxu0 0.0
  %1818 = vmatprep.subr.mxu0 0.0
  %1819 = vmatpush2.msra.mxu0 0.0
  %1820 = vmatprep.subr.mxu0 0.0
  %1821 = vmatpush2.msra.mxu0 0.0
  %1822 = vmatprep.subr.mxu0 0.0
  %1823 = vmatpush2.msra.mxu0 0.0
  %1824 = vmatprep.subr.mxu0 0.0
  %1825 = vmatpush2.msra.mxu0 0.0
  %1826 = vmatprep.subr.mxu0 0.0
  %1827 = vmatpush2.msra.mxu0 0.0
  %1828 = vmatprep.subr.mxu0 0.0
  %1829 = vmatpush2.msra.mxu0 0.0
  %1830 = vmatprep.subr.mxu0 0.0
  %1831 = vmatpush2.msra.mxu0 %v1762
  %1832 = vmatprep.subr.mxu0 0.0
  %1833 = vmatpush2.msra.mxu0 %v1761
  %1834 = vmatprep.subr.mxu0 0.0
  %1835 = vmatpush2.msra.mxu0 %v1760
  %1836 = vmatprep.subr.mxu0 0.0
  %1837 = vmatpush2.msra.mxu0 %v1759
  %1838 = vmatprep.mubr.f32.mxu0 %v1769
  %1839 = vmatmul.mubr.f32.gmra.mxu0 %v1739
  %v1840 = vpop.f32.mrf.mxu0
  %v1841 = vadd.f32 %v1766, %v1840
  %v1842 = vpop.f32.mrf.mxu0
  %1843 = vmatprep.mubr.f32.mxu0 %v1772
  %1844 = vmatmul.mubr.f32.gmra.mxu0 %v1741
  %v1845 = vpop.f32.mrf.mxu0
  %v1846 = vadd.f32 %v1766, %v1845
  %v1847 = vpop.f32.mrf.mxu0
  %1848 = vdwg.mxu0
  %v1849 = vadd.f32 %v1632, %v1841
  %v1850 = vadd.f32 %v1633, %v1846
  %v1851 = vsel %vm56, %v1849, 0.0
  %1852 = vadd.xlane.f32.xlu0 %v1851
  %v1853 = vpop.xlane.xlu0 %1852
  %v1854 = vsel %vm56, %v1850, 0.0
  %1855 = vadd.xlane.f32.xlu0 %v1854
  %v1856 = vpop.xlane.xlu0 %1855
  %v1857 = vmul.f32 %v1853, 0.025
  %v1858 = vmul.f32 %v1856, 0.025
  %v1859 = vsub.f32 %v1849, %v1857
  %v1860 = vsub.f32 %v1850, %v1858
  %v1861 = vmul.f32 %v1859, %v1859
  %v1862 = vmul.f32 %v1860, %v1860
  %v1863 = vsel %vm56, %v1861, 0.0
  %1864 = vadd.xlane.f32.xlu0 %v1863
  %v1865 = vpop.xlane.xlu0 %1864
  %v1866 = vsel %vm56, %v1862, 0.0
  %1867 = vadd.xlane.f32.xlu0 %v1866
  %v1868 = vpop.xlane.xlu0 %1867
  %v1869 = vmul.f32 %v1865, 0.025
  %v1870 = vmul.f32 %v1868, 0.025
  %v1871 = vadd.f32 %v1869, 1e-05
  %v1872 = vadd.f32 %v1870, 1e-05
  %v1873 = vrsqrt.pop %v1871
  %v1874 = vrsqrt.pop %v1872
  %v1875 = vmul.f32 %v1859, %v1873
  %v1876 = vmul.f32 %v1860, %v1874
  %v1877 = vlaneseq
  %v1878 = vshrl.u32 %v1877, 7
  %v1879 = vsub.s32 4, %v1878
  %v1880 = vrot.slane %v38, %v1879
  %v1881 = vmul.f32 %v1875, %v1880
  %v1882 = vmul.f32 %v1876, %v1880
  %v1883 = vlaneseq
  %v1884 = vshrl.u32 %v1883, 7
  %v1885 = vsub.s32 5, %v1884
  %v1886 = vrot.slane %v38, %v1885
  %v1887 = vadd.f32 %v1881, %v1886
  %v1888 = vadd.f32 %v1882, %v1886
  %v1889 = vsel %vm56, %v1887, 0.0
  %v1890 = vrot.slane %v1889, 4
  %v1891 = vadd.f32 %v1889, %v1890
  %v1892 = vrot.slane %v1891, 2
  %v1893 = vadd.f32 %v1891, %v1892
  %v1894 = vrot.slane %v1893, 1
  %v1895 = vadd.f32 %v1893, %v1894
  %v1896 = vsel %vm56, %v1888, 0.0
  %v1897 = vrot.slane %v1896, 4
  %v1898 = vadd.f32 %v1896, %v1897
  %v1899 = vrot.slane %v1898, 2
  %v1900 = vadd.f32 %v1898, %v1899
  %v1901 = vrot.slane %v1900, 1
  %v1902 = vadd.f32 %v1900, %v1901
  %v1903 = vmul.f32 %v1895, 0.125
  %v1904 = vmul.f32 %v1902, 0.125
  %v1905 = vld [vmem:[%s10] sm:$0xff]
  %v1906 = vld [vmem:[%s10 + $0x8] sm:$0xff]
  %v1907 = vld [vmem:[%s10 + $0x10] sm:$0xff]
  %v1908 = vld [vmem:[%s10 + $0x18] sm:$0xff]
  %v1909 = vld [vmem:[%s10 + $0x20] sm:$0xff]
  %v1910 = vld [vmem:[%s10 + $0x28] sm:$0x1]
  %v1911 = vlaneseq
  %v1912 = vshrl.u32 %v1911, 7
  %v1913 = vsub.s32 0, %v1912
  %v1914 = vrot.slane %v1910, %v1913
  %vm1917 = vcmask 1041409
  %v1918 = vsel %vm1917, %v1904, %v1903
  %v1919 = vsel %vm56, %v1918, 0
  %1921 = vmatprep.subr.mxu0 0.0
  %1922 = vmatpush1.msra.mxu0 0.0
  %1923 = vmatprep.subr.mxu0 0.0
  %1924 = vmatpush1.msra.mxu0 0.0
  %1925 = vmatprep.subr.mxu0 0.0
  %1926 = vmatpush1.msra.mxu0 0.0
  %1927 = vmatprep.subr.mxu0 0.0
  %1928 = vmatpush1.msra.mxu0 0.0
  %1929 = vmatprep.subr.mxu0 0.0
  %1930 = vmatpush1.msra.mxu0 0.0
  %1931 = vmatprep.subr.mxu0 0.0
  %1932 = vmatpush1.msra.mxu0 0.0
  %1933 = vmatprep.subr.mxu0 0.0
  %1934 = vmatpush1.msra.mxu0 0.0
  %1935 = vmatprep.subr.mxu0 0.0
  %1936 = vmatpush1.msra.mxu0 0.0
  %1937 = vmatprep.subr.mxu0 0.0
  %1938 = vmatpush1.msra.mxu0 0.0
  %1939 = vmatprep.subr.mxu0 0.0
  %1940 = vmatpush1.msra.mxu0 0.0
  %1941 = vmatprep.subr.mxu0 0.0
  %1942 = vmatpush1.msra.mxu0 0.0
  %1943 = vmatprep.subr.mxu0 0.0
  %1944 = vmatpush1.msra.mxu0 %v1909
  %1945 = vmatprep.subr.mxu0 0.0
  %1946 = vmatpush1.msra.mxu0 %v1908
  %1947 = vmatprep.subr.mxu0 0.0
  %1948 = vmatpush1.msra.mxu0 %v1907
  %1949 = vmatprep.subr.mxu0 0.0
  %1950 = vmatpush1.msra.mxu0 %v1906
  %1951 = vmatprep.subr.mxu0 0.0
  %1952 = vmatpush1.msra.mxu0 %v1905
  %1953 = vmatprep.subr.mxu0 0.0
  %1954 = vmatpush2.msra.mxu0 0.0
  %1955 = vmatprep.subr.mxu0 0.0
  %1956 = vmatpush2.msra.mxu0 0.0
  %1957 = vmatprep.subr.mxu0 0.0
  %1958 = vmatpush2.msra.mxu0 0.0
  %1959 = vmatprep.subr.mxu0 0.0
  %1960 = vmatpush2.msra.mxu0 0.0
  %1961 = vmatprep.subr.mxu0 0.0
  %1962 = vmatpush2.msra.mxu0 0.0
  %1963 = vmatprep.subr.mxu0 0.0
  %1964 = vmatpush2.msra.mxu0 0.0
  %1965 = vmatprep.subr.mxu0 0.0
  %1966 = vmatpush2.msra.mxu0 0.0
  %1967 = vmatprep.subr.mxu0 0.0
  %1968 = vmatpush2.msra.mxu0 0.0
  %1969 = vmatprep.subr.mxu0 0.0
  %1970 = vmatpush2.msra.mxu0 0.0
  %1971 = vmatprep.subr.mxu0 0.0
  %1972 = vmatpush2.msra.mxu0 0.0
  %1973 = vmatprep.subr.mxu0 0.0
  %1974 = vmatpush2.msra.mxu0 0.0
  %1975 = vmatprep.subr.mxu0 0.0
  %1976 = vmatpush2.msra.mxu0 0.0
  %1977 = vmatprep.subr.mxu0 0.0
  %1978 = vmatpush2.msra.mxu0 0.0
  %1979 = vmatprep.subr.mxu0 0.0
  %1980 = vmatpush2.msra.mxu0 0.0
  %1981 = vmatprep.subr.mxu0 0.0
  %1982 = vmatpush2.msra.mxu0 0.0
  %1983 = vmatprep.subr.mxu0 0.0
  %1984 = vmatpush2.msra.mxu0 0.0
  %1985 = vmatprep.mubr.f32.mxu0 0.0
  %1986 = vmatmul.mubr.f32.gmra.mxu0 %v1919
  %v1987 = vpop.f32.mrf.mxu0
  %v1988 = vadd.f32 %v1914, %v1987
  %v1989 = vpop.f32.mrf.mxu0
  %1990 = vdwg.mxu0
  %vm1991 = vcmask 1024
  %1992 = vst.msk [vmem:[%s11] sm:$0x3] %vm1991, %v1988
  // Predicated region
  $region46: #{tpu_custom_call.1} parent=0 // pred_check
    _
  $region47: #{tpu_custom_call.1} parent=0 // pred_check_branch
    %1994 = sbr.rel (0) target = $region49
  $region48: #{tpu_custom_call.1} parent=0 // pred_region
    _
  $region49: #{tpu_custom_call.1} parent=0 // pred_fallthru
    _
  // Predicated region
  $region50: #{tpu_custom_call.1} parent=0 // pred_check
    _
  $region51: #{tpu_custom_call.1} parent=0 // pred_check_branch
    %1996 = sbr.rel (0) target = $region53
  $region52: #{tpu_custom_call.1} parent=0 // pred_region
    _
  $region53: #{tpu_custom_call.1} parent=0 // pred_fallthru
    _

</llo_original>
